<compile_context>
chip_gen: v5e
topology: v5e:2x2
jax: 0.10.0
libtpu: 0.0.40
codegen_flags: <defaults>
</compile_context>

<pallas_src>
import functools

import jax
import jax.numpy as jnp
from jax.experimental import pallas as pl
from jax.experimental.pallas import tpu as pltpu


def _next_pow2(x):
    return 1 << (max(1, int(x)) - 1).bit_length()


def _vmem_limit_bytes():
    """Per-generation scoped-VMEM budget (review item: don't use one flat constant)."""
    try:
        cap = pltpu.get_tpu_info().vmem_capacity_bytes
        return int(min(cap * 3 // 4, 100 * 1024 * 1024))   # ~48 MiB v7x, ~96 MiB v5e/v6e
    except Exception:  # pragma: no cover - conservative fallback
        return 48 * 1024 * 1024


def _fold_bn(w_oihw, gamma, beta, mean, var, eps=1e-5):
    """Fold inference-mode BatchNorm into the conv weight and a per-channel bias."""
    scale = gamma / jnp.sqrt(var + eps)                       # [Cout]
    w = jnp.transpose(w_oihw, (2, 3, 1, 0)) * scale           # [3,3,Cin,Cout] * scale
    bias = beta - mean * scale                                # [Cout]
    return w, bias


# ---------------------------------------------------------------------------
# Fused Pallas kernel: conv1(s2) -> conv2(s1) -> conv3(s1) -> maxpool(3x3,s2)
# ---------------------------------------------------------------------------
def _fused_tokenizer_kernel(p_ref, w1_ref, b1_ref, w2_ref, b2_ref, w3_ref, b3_ref,
                            o_ref, c3_ref, *, H1, W1, wp, Ho, Wo):
    """One image per grid step; all intermediates stay in VMEM.

    p_ref : [1, mp, K1]       conv1 im2col patches in padded-canvas row order (bf16)
    w1_ref: [K1, C1]          conv1 weight, BN scale folded (bf16)
    w2_ref: [3, 3*C1, C1]     conv2 weight slabs per kernel-row di, dj merged into K (bf16)
    w3_ref: [3, 3*C1, C2]     conv3 weight slabs (bf16)
    b*_ref: [1, C]            folded BN biases (fp32)
    o_ref : [1, Ho*Wo, C2]    pooled output (fp32)
    c3_ref: [mp+8, C2]        fp32 scratch for the strided pooling reads
    """
    hp = H1 + 2
    mp = hp * wp
    ext = wp + 1
    L = mp + 2 * wp
    half_w = wp // 2

    # Interior mask over the flattened padded grid (wp is a power of two -> bit ops).
    m_idx = jax.lax.broadcasted_iota(jnp.int32, (mp, 1), 0)
    col = jnp.bitwise_and(m_idx, wp - 1)
    interior = ((col >= 1) & (col <= W1) & (m_idx >= wp) & (m_idx < (H1 + 1) * wp))
    fmask = interior.astype(jnp.float32)

    def conv3x3_s1(canvas, w_ref, b_ref):
        """canvas: [mp, cin] bf16, zero outside the interior.  Returns fp32 [mp, cout]."""
        cin = canvas.shape[-1]
        cout = w_ref.shape[-1]
        zext = jnp.zeros((ext, cin), canvas.dtype)
        cs = jnp.concatenate([zext, canvas, zext], axis=0)                 # [L+2, cin]
        # dj = -1/0/+1 taps merged along channels -> K = 3*cin per MXU push.
        cw = jnp.concatenate([cs[0:L], cs[1:L + 1], cs[2:L + 2]], axis=-1)  # [L, 3*cin]
        acc = jnp.zeros((mp, cout), jnp.float32)
        for di in range(3):                      # di shifts are multiples of wp (aligned)
            acc = acc + jnp.dot(cw[di * wp:di * wp + mp, :], w_ref[di],
                                preferred_element_type=jnp.float32)
        return jnp.maximum(acc + b_ref[...], 0.0) * fmask

    # --- conv1 (3x3 / s2) + BN + ReLU: one MXU matmul on padded-order patches ---------
    y1 = jnp.dot(p_ref[0], w1_ref[...], preferred_element_type=jnp.float32)
    y1 = (jnp.maximum(y1 + b1_ref[...], 0.0) * fmask).astype(jnp.bfloat16)

    # --- conv2 / conv3 (3x3 / s1) + BN + ReLU on the in-VMEM canvas --------------------
    y2 = conv3x3_s1(y1, w2_ref, b2_ref).astype(jnp.bfloat16)
    y3 = conv3x3_s1(y2, w3_ref, b3_ref)                                    # [mp, C2] fp32

    # --- fused 3x3 / s2 / pad-1 max pool (zero canvas border == padding, valid >= 0) ---
    cout3 = y3.shape[-1]
    pad_rows = c3_ref.shape[0] - mp
    c3_ref[0:mp, :] = y3
    c3_ref[mp:mp + pad_rows, :] = jnp.zeros((pad_rows, cout3), jnp.float32)
    ev0 = c3_ref[pl.ds(0, mp // 2, 2), :]       # even columns of every canvas row
    od0 = c3_ref[pl.ds(1, mp // 2, 2), :]       # odd columns
    ev1 = c3_ref[pl.ds(2, mp // 2, 2), :]       # even columns shifted by one pair
    hmax = jnp.maximum(jnp.maximum(ev0, od0), ev1)   # horizontal window max, [mp//2, C2]
    rows = []
    for oi in range(Ho):                              # Ho is small & static -> unrolled
        r0 = hmax[(2 * oi + 0) * half_w:(2 * oi + 0) * half_w + Wo, :]
        r1 = hmax[(2 * oi + 1) * half_w:(2 * oi + 1) * half_w + Wo, :]
        r2 = hmax[(2 * oi + 2) * half_w:(2 * oi + 2) * half_w + Wo, :]
        rows.append(jnp.maximum(jnp.maximum(r0, r1), r2))
    o_ref[0] = jnp.concatenate(rows, axis=0)


# ---------------------------------------------------------------------------
# Wrapper
# ---------------------------------------------------------------------------
def _conv1_patches_canvas(x_nhwc, H1, W1, hp, wp, k_pad):
    """im2col (3x3, s=2, p=1) of the 3-channel input, laid out in padded-canvas
    row order: [N, hp*wp, k_pad].  Border / extra-column rows are all-zero patches."""
    N, H, W, Cin = x_nhwc.shape
    xp = jnp.pad(x_nhwc, ((0, 0), (1, 1), (1, 1), (0, 0)))
    slabs = [xp[:, di:di + 2 * H1:2, dj:dj + 2 * W1:2, :]
             for di in range(3) for dj in range(3)]
    p = jnp.concatenate(slabs, axis=-1)                                   # [N,H1,W1,9*Cin]
    p = jnp.pad(p, ((0, 0), (1, hp - 1 - H1), (1, wp - 1 - W1),
                    (0, k_pad - 9 * Cin)))                                # canvas order
    return p.reshape(N, hp * wp, k_pad).astype(jnp.bfloat16)


@jax.jit
def conv_tokenizer_forward(x_nchw, params):
    # NCHW -> NHWC for the kernel.
    x = jnp.transpose(x_nchw, (0, 2, 3, 1)).astype(jnp.float32)
    N, H, W, _ = x.shape
    C1 = params["w2"].shape[0]          # embedding_dim // 2
    C2 = params["w3"].shape[0]          # embedding_dim

    H1 = (H - 1) // 2 + 1               # conv1 output size (3x3, s=2, p=1)
    W1 = (W - 1) // 2 + 1
    hp = H1 + 2
    wp = max(8, _next_pow2(W1 + 2))     # canvas row width: power of two -> aligned shifts
    mp = hp * wp
    Ho = (H1 - 1) // 2 + 1              # pool output size (3x3, s=2, p=1)
    Wo = (W1 - 1) // 2 + 1

    K1 = 32                             # 9 * 3 = 27 im2col channels, padded to 32
    patches = _conv1_patches_canvas(x, H1, W1, hp, wp, K1)

    w1f, b1f = _fold_bn(params["w1"], *params["bn1"])
    w2f, b2f = _fold_bn(params["w2"], *params["bn2"])
    w3f, b3f = _fold_bn(params["w3"], *params["bn3"])
    w1m = jnp.pad(w1f.reshape(27, C1), ((0, K1 - 27), (0, 0))).astype(jnp.bfloat16)
    w2m = w2f.reshape(3, 3 * C1, C1).astype(jnp.bfloat16)
    w3m = w3f.reshape(3, 3 * C1, C2).astype(jnp.bfloat16)
    b1m = b1f.reshape(1, C1).astype(jnp.float32)
    b2m = b2f.reshape(1, C1).astype(jnp.float32)
    b3m = b3f.reshape(1, C2).astype(jnp.float32)

    kernel = functools.partial(_fused_tokenizer_kernel,
                               H1=H1, W1=W1, wp=wp, Ho=Ho, Wo=Wo)
    flops = 2 * N * mp * (K1 * C1 + 9 * C1 * C1 + 9 * C1 * C2)
    weight_bytes = (K1 * C1 + 3 * 3 * C1 * C1 + 3 * 3 * C1 * C2) * 2
    out = pl.pallas_call(
        kernel,
        out_shape=jax.ShapeDtypeStruct((N, Ho * Wo, C2), jnp.float32),
        grid=(N,),
        in_specs=[
            pl.BlockSpec((1, mp, K1), lambda n: (n, 0, 0)),
            pl.BlockSpec((K1, C1), lambda n: (0, 0)),
            pl.BlockSpec((1, C1), lambda n: (0, 0)),
            pl.BlockSpec((3, 3 * C1, C1), lambda n: (0, 0, 0)),
            pl.BlockSpec((1, C1), lambda n: (0, 0)),
            pl.BlockSpec((3, 3 * C1, C2), lambda n: (0, 0, 0)),
            pl.BlockSpec((1, C2), lambda n: (0, 0)),
        ],
        out_specs=pl.BlockSpec((1, Ho * Wo, C2), lambda n: (n, 0, 0)),
        scratch_shapes=[pltpu.VMEM((mp + 8, C2), jnp.float32)],
        compiler_params=pltpu.CompilerParams(
            dimension_semantics=("parallel",),
            vmem_limit_bytes=_vmem_limit_bytes()),
        cost_estimate=pl.CostEstimate(
            flops=flops, transcendentals=0,
            bytes_accessed=N * mp * K1 * 2 + weight_bytes + N * Ho * Wo * C2 * 4),
    )(patches, w1m, b1m, w2m, b2m, w3m, b3m)

    y = out.reshape(N, Ho, Wo, C2)
    return jnp.transpose(y, (0, 3, 1, 2))           # NHWC -> NCHW


# ---------------------------------------------------------------------------
# Parameters + pure-JAX reference (correctness check)
# ---------------------------------------------------------------------------
def init_conv_tokenizer_params(key, embedding_dim=64):
    c_half = embedding_dim // 2
    keys = jax.random.split(key, 12)

    def conv_w(k, cout, cin):
        return jax.random.normal(k, (cout, cin, 3, 3), jnp.float32) * 0.1

    def bn(k0, k1, k2, c):
        gamma = 1.0 + 0.05 * jax.random.normal(k0, (c,), jnp.float32)
        beta = 0.05 * jax.random.normal(k1, (c,), jnp.float32)
        mean = 0.05 * jax.random.normal(k2, (c,), jnp.float32)
        var = jnp.ones((c,), jnp.float32)
        return gamma, beta, mean, var

    return {
        "w1": conv_w(keys[0], c_half, 3),
        "bn1": bn(keys[1], keys[2], keys[3], c_half),
        "w2": conv_w(keys[4], c_half, c_half),
        "bn2": bn(keys[5], keys[6], keys[7], c_half),
        "w3": conv_w(keys[8], embedding_dim, c_half),
        "bn3": bn(keys[9], keys[10], keys[11], embedding_dim),
    }


def _reference_forward(x_nchw, params, eps=1e-5):
    def conv_bn_relu(x, w, bn, stride):
        g, b, m, v = bn
        y = jax.lax.conv_general_dilated(
            x, w, (stride, stride), ((1, 1), (1, 1)),
            dimension_numbers=("NCHW", "OIHW", "NCHW"))
        scale = g / jnp.sqrt(v + eps)
        y = y * scale[None, :, None, None] + (b - m * scale)[None, :, None, None]
        return jnp.maximum(y, 0.0)

    x = conv_bn_relu(x_nchw, params["w1"], params["bn1"], 2)
    x = conv_bn_relu(x, params["w2"], params["bn2"], 1)
    x = conv_bn_relu(x, params["w3"], params["bn3"], 1)
    return jax.lax.reduce_window(
        x, -jnp.inf, jax.lax.max, (1, 1, 3, 3), (1, 1, 2, 2),
        padding=((0, 0), (0, 0), (1, 1), (1, 1)))


if __name__ == "__main__":
    key = jax.random.PRNGKey(0)
    k_x, k_p = jax.random.split(key)

    embedding_dim = 64
    # Small input consistent with the module: NCHW [2, 3, 16, 16]
    x = jax.random.normal(k_x, (2, 3, 16, 16), jnp.float32)
    params = init_conv_tokenizer_params(k_p, embedding_dim)

    out = conv_tokenizer_forward(x, params)
    out = jax.block_until_ready(out)

    expected_shape = (2, embedding_dim, 4, 4)
    assert out.shape == expected_shape, (out.shape, expected_shape)
    assert bool(jnp.all(jnp.isfinite(out))), "non-finite output"

    ref = _reference_forward(x, params)
    err = float(jnp.max(jnp.abs(out - ref)))
    assert err < 2e-1, f"mismatch vs pure-JAX reference: max abs err {err}"

    print("KERNEL_OK")
</pallas_src>

<mosaic_0001>
module attributes {stable_mosaic.version = 11 : i64} {
  func.func @_fused_tokenizer_kernel(%arg0: i32, %arg1: memref<1x160x32xbf16, #tpu.memory_space<vmem>>, %arg2: memref<32x32xbf16, #tpu.memory_space<vmem>>, %arg3: memref<1x32xf32, #tpu.memory_space<vmem>>, %arg4: memref<3x96x32xbf16, #tpu.memory_space<vmem>>, %arg5: memref<1x32xf32, #tpu.memory_space<vmem>>, %arg6: memref<3x96x64xbf16, #tpu.memory_space<vmem>>, %arg7: memref<1x64xf32, #tpu.memory_space<vmem>>, %arg8: memref<1x16x64xf32, #tpu.memory_space<vmem>>, %arg9: memref<168x64xf32, #tpu.memory_space<vmem>>) attributes {dimension_semantics = [#tpu.dimension_semantics<parallel>], iteration_bounds = array<i64: 2>, scalar_prefetch = 0 : i64, scratch_operands = 1 : i64, tpu.core_type = #tpu.core_type<tc>, window_params = [{transform_indices = @transform_0, window_bounds = array<i64: 1, 160, 32>}, {pipeline_mode = #tpu.pipeline_mode<synchronous>, transform_indices = @transform_1, window_bounds = array<i64: 32, 32>}, {pipeline_mode = #tpu.pipeline_mode<synchronous>, transform_indices = @transform_2, window_bounds = array<i64: 1, 32>}, {pipeline_mode = #tpu.pipeline_mode<synchronous>, transform_indices = @transform_3, window_bounds = array<i64: 3, 96, 32>}, {pipeline_mode = #tpu.pipeline_mode<synchronous>, transform_indices = @transform_4, window_bounds = array<i64: 1, 32>}, {pipeline_mode = #tpu.pipeline_mode<synchronous>, transform_indices = @transform_5, window_bounds = array<i64: 3, 96, 64>}, {pipeline_mode = #tpu.pipeline_mode<synchronous>, transform_indices = @transform_6, window_bounds = array<i64: 1, 64>}, {transform_indices = @transform_7, window_bounds = array<i64: 1, 16, 64>}]} {
    %0 = tpu.iota {dimensions = array<i32: 0>} : vector<160x1xi32>
    %c15_i32 = arith.constant 15 : i32
    %1 = vector.broadcast %c15_i32 : i32 to vector<160x1xi32>
    %2 = arith.andi %0, %1 : vector<160x1xi32>
    %c1_i32 = arith.constant 1 : i32
    %3 = vector.broadcast %c1_i32 : i32 to vector<160x1xi32>
    %4 = arith.cmpi sge, %2, %3 : vector<160x1xi32>
    %c8_i32 = arith.constant 8 : i32
    %5 = vector.broadcast %c8_i32 : i32 to vector<160x1xi32>
    %6 = arith.cmpi sle, %2, %5 : vector<160x1xi32>
    %7 = arith.andi %4, %6 : vector<160x1xi1>
    %c16_i32 = arith.constant 16 : i32
    %8 = vector.broadcast %c16_i32 : i32 to vector<160x1xi32>
    %9 = arith.cmpi sge, %0, %8 : vector<160x1xi32>
    %10 = arith.andi %7, %9 : vector<160x1xi1>
    %c144_i32 = arith.constant 144 : i32
    %11 = vector.broadcast %c144_i32 : i32 to vector<160x1xi32>
    %12 = arith.cmpi slt, %0, %11 : vector<160x1xi32>
    %13 = arith.andi %10, %12 : vector<160x1xi1>
    %14 = arith.extui %13 : vector<160x1xi1> to vector<160x1xi32>
    %15 = arith.sitofp %14 : vector<160x1xi32> to vector<160x1xf32>
    %c0 = arith.constant 0 : index
    %c0_0 = arith.constant 0 : index
    %c0_1 = arith.constant 0 : index
    %16 = vector.load %arg1[%c0, %c0_0, %c0_1] : memref<1x160x32xbf16, #tpu.memory_space<vmem>>, vector<1x160x32xbf16>
    %17 = vector.shape_cast %16 : vector<1x160x32xbf16> to vector<160x32xbf16>
    %c0_2 = arith.constant 0 : index
    %c0_3 = arith.constant 0 : index
    %18 = vector.load %arg2[%c0_2, %c0_3] : memref<32x32xbf16, #tpu.memory_space<vmem>>, vector<32x32xbf16>
    %cst = arith.constant dense<0.000000e+00> : vector<160x32xf32>
    %19 = tpu.matmul %17, %18, %cst {dimension_numbers = #tpu.dot_dimension_numbers<[1], [0], [0], [1], [0, 0, 1, 1], [], []>} : vector<160x32xbf16>, vector<32x32xbf16>, vector<160x32xf32> -> vector<160x32xf32>
    %c0_4 = arith.constant 0 : index
    %c0_5 = arith.constant 0 : index
    %20 = vector.load %arg3[%c0_4, %c0_5] : memref<1x32xf32, #tpu.memory_space<vmem>>, vector<1x32xf32>
    %21 = vector.broadcast %20 : vector<1x32xf32> to vector<160x32xf32>
    %22 = arith.addf %19, %21 : vector<160x32xf32>
    %cst_6 = arith.constant 0.000000e+00 : f32
    %23 = vector.broadcast %cst_6 : f32 to vector<160x32xf32>
    %24 = arith.maximumf %22, %23 : vector<160x32xf32>
    %25 = vector.broadcast %15 : vector<160x1xf32> to vector<160x32xf32>
    %26 = arith.mulf %24, %25 : vector<160x32xf32>
    %27 = arith.truncf %26 : vector<160x32xf32> to vector<160x32xbf16>
    %cst_7 = arith.constant 0.000000e+00 : bf16
    %28 = vector.broadcast %cst_7 : bf16 to vector<17x32xbf16>
    %29 = tpu.concatenate %28, %27, %28 in 0 : vector<17x32xbf16>, vector<160x32xbf16>, vector<17x32xbf16> -> vector<194x32xbf16>
    %30 = vector.extract_strided_slice %29 {offsets = [0, 0], sizes = [192, 32], strides = [1, 1]} : vector<194x32xbf16> to vector<192x32xbf16>
    %31 = vector.extract_strided_slice %29 {offsets = [1, 0], sizes = [192, 32], strides = [1, 1]} : vector<194x32xbf16> to vector<192x32xbf16>
    %32 = vector.extract_strided_slice %29 {offsets = [2, 0], sizes = [192, 32], strides = [1, 1]} : vector<194x32xbf16> to vector<192x32xbf16>
    %33 = tpu.concatenate %30, %31, %32 in 1 : vector<192x32xbf16>, vector<192x32xbf16>, vector<192x32xbf16> -> vector<192x96xbf16>
    %cst_8 = arith.constant 0.000000e+00 : f32
    %34 = vector.broadcast %cst_8 : f32 to vector<160x32xf32>
    %35 = vector.extract_strided_slice %33 {offsets = [0, 0], sizes = [160, 96], strides = [1, 1]} : vector<192x96xbf16> to vector<160x96xbf16>
    %c0_9 = arith.constant 0 : index
    %c0_10 = arith.constant 0 : index
    %c0_11 = arith.constant 0 : index
    %36 = vector.load %arg4[%c0_9, %c0_10, %c0_11] : memref<3x96x32xbf16, #tpu.memory_space<vmem>>, vector<1x96x32xbf16>
    %37 = vector.shape_cast %36 : vector<1x96x32xbf16> to vector<96x32xbf16>
    %cst_12 = arith.constant dense<0.000000e+00> : vector<160x32xf32>
    %38 = tpu.matmul %35, %37, %cst_12 {dimension_numbers = #tpu.dot_dimension_numbers<[1], [0], [0], [1], [0, 0, 1, 1], [], []>} : vector<160x96xbf16>, vector<96x32xbf16>, vector<160x32xf32> -> vector<160x32xf32>
    %39 = arith.addf %34, %38 : vector<160x32xf32>
    %40 = vector.extract_strided_slice %33 {offsets = [16, 0], sizes = [160, 96], strides = [1, 1]} : vector<192x96xbf16> to vector<160x96xbf16>
    %c1 = arith.constant 1 : index
    %c0_13 = arith.constant 0 : index
    %c0_14 = arith.constant 0 : index
    %41 = vector.load %arg4[%c1, %c0_13, %c0_14] : memref<3x96x32xbf16, #tpu.memory_space<vmem>>, vector<1x96x32xbf16>
    %42 = vector.shape_cast %41 : vector<1x96x32xbf16> to vector<96x32xbf16>
    %cst_15 = arith.constant dense<0.000000e+00> : vector<160x32xf32>
    %43 = tpu.matmul %40, %42, %cst_15 {dimension_numbers = #tpu.dot_dimension_numbers<[1], [0], [0], [1], [0, 0, 1, 1], [], []>} : vector<160x96xbf16>, vector<96x32xbf16>, vector<160x32xf32> -> vector<160x32xf32>
    %44 = arith.addf %39, %43 : vector<160x32xf32>
    %45 = vector.extract_strided_slice %33 {offsets = [32, 0], sizes = [160, 96], strides = [1, 1]} : vector<192x96xbf16> to vector<160x96xbf16>
    %c2 = arith.constant 2 : index
    %c0_16 = arith.constant 0 : index
    %c0_17 = arith.constant 0 : index
    %46 = vector.load %arg4[%c2, %c0_16, %c0_17] : memref<3x96x32xbf16, #tpu.memory_space<vmem>>, vector<1x96x32xbf16>
    %47 = vector.shape_cast %46 : vector<1x96x32xbf16> to vector<96x32xbf16>
    %cst_18 = arith.constant dense<0.000000e+00> : vector<160x32xf32>
    %48 = tpu.matmul %45, %47, %cst_18 {dimension_numbers = #tpu.dot_dimension_numbers<[1], [0], [0], [1], [0, 0, 1, 1], [], []>} : vector<160x96xbf16>, vector<96x32xbf16>, vector<160x32xf32> -> vector<160x32xf32>
    %49 = arith.addf %44, %48 : vector<160x32xf32>
    %c0_19 = arith.constant 0 : index
    %c0_20 = arith.constant 0 : index
    %50 = vector.load %arg5[%c0_19, %c0_20] : memref<1x32xf32, #tpu.memory_space<vmem>>, vector<1x32xf32>
    %51 = vector.broadcast %50 : vector<1x32xf32> to vector<160x32xf32>
    %52 = arith.addf %49, %51 : vector<160x32xf32>
    %cst_21 = arith.constant 0.000000e+00 : f32
    %53 = vector.broadcast %cst_21 : f32 to vector<160x32xf32>
    %54 = arith.maximumf %52, %53 : vector<160x32xf32>
    %55 = vector.broadcast %15 : vector<160x1xf32> to vector<160x32xf32>
    %56 = arith.mulf %54, %55 : vector<160x32xf32>
    %57 = arith.truncf %56 : vector<160x32xf32> to vector<160x32xbf16>
    %cst_22 = arith.constant 0.000000e+00 : bf16
    %58 = vector.broadcast %cst_22 : bf16 to vector<17x32xbf16>
    %59 = tpu.concatenate %58, %57, %58 in 0 : vector<17x32xbf16>, vector<160x32xbf16>, vector<17x32xbf16> -> vector<194x32xbf16>
    %60 = vector.extract_strided_slice %59 {offsets = [0, 0], sizes = [192, 32], strides = [1, 1]} : vector<194x32xbf16> to vector<192x32xbf16>
    %61 = vector.extract_strided_slice %59 {offsets = [1, 0], sizes = [192, 32], strides = [1, 1]} : vector<194x32xbf16> to vector<192x32xbf16>
    %62 = vector.extract_strided_slice %59 {offsets = [2, 0], sizes = [192, 32], strides = [1, 1]} : vector<194x32xbf16> to vector<192x32xbf16>
    %63 = tpu.concatenate %60, %61, %62 in 1 : vector<192x32xbf16>, vector<192x32xbf16>, vector<192x32xbf16> -> vector<192x96xbf16>
    %cst_23 = arith.constant 0.000000e+00 : f32
    %64 = vector.broadcast %cst_23 : f32 to vector<160x64xf32>
    %65 = vector.extract_strided_slice %63 {offsets = [0, 0], sizes = [160, 96], strides = [1, 1]} : vector<192x96xbf16> to vector<160x96xbf16>
    %c0_24 = arith.constant 0 : index
    %c0_25 = arith.constant 0 : index
    %c0_26 = arith.constant 0 : index
    %66 = vector.load %arg6[%c0_24, %c0_25, %c0_26] : memref<3x96x64xbf16, #tpu.memory_space<vmem>>, vector<1x96x64xbf16>
    %67 = vector.shape_cast %66 : vector<1x96x64xbf16> to vector<96x64xbf16>
    %cst_27 = arith.constant dense<0.000000e+00> : vector<160x64xf32>
    %68 = tpu.matmul %65, %67, %cst_27 {dimension_numbers = #tpu.dot_dimension_numbers<[1], [0], [0], [1], [0, 0, 1, 1], [], []>} : vector<160x96xbf16>, vector<96x64xbf16>, vector<160x64xf32> -> vector<160x64xf32>
    %69 = arith.addf %64, %68 : vector<160x64xf32>
    %70 = vector.extract_strided_slice %63 {offsets = [16, 0], sizes = [160, 96], strides = [1, 1]} : vector<192x96xbf16> to vector<160x96xbf16>
    %c1_28 = arith.constant 1 : index
    %c0_29 = arith.constant 0 : index
    %c0_30 = arith.constant 0 : index
    %71 = vector.load %arg6[%c1_28, %c0_29, %c0_30] : memref<3x96x64xbf16, #tpu.memory_space<vmem>>, vector<1x96x64xbf16>
    %72 = vector.shape_cast %71 : vector<1x96x64xbf16> to vector<96x64xbf16>
    %cst_31 = arith.constant dense<0.000000e+00> : vector<160x64xf32>
    %73 = tpu.matmul %70, %72, %cst_31 {dimension_numbers = #tpu.dot_dimension_numbers<[1], [0], [0], [1], [0, 0, 1, 1], [], []>} : vector<160x96xbf16>, vector<96x64xbf16>, vector<160x64xf32> -> vector<160x64xf32>
    %74 = arith.addf %69, %73 : vector<160x64xf32>
    %75 = vector.extract_strided_slice %63 {offsets = [32, 0], sizes = [160, 96], strides = [1, 1]} : vector<192x96xbf16> to vector<160x96xbf16>
    %c2_32 = arith.constant 2 : index
    %c0_33 = arith.constant 0 : index
    %c0_34 = arith.constant 0 : index
    %76 = vector.load %arg6[%c2_32, %c0_33, %c0_34] : memref<3x96x64xbf16, #tpu.memory_space<vmem>>, vector<1x96x64xbf16>
    %77 = vector.shape_cast %76 : vector<1x96x64xbf16> to vector<96x64xbf16>
    %cst_35 = arith.constant dense<0.000000e+00> : vector<160x64xf32>
    %78 = tpu.matmul %75, %77, %cst_35 {dimension_numbers = #tpu.dot_dimension_numbers<[1], [0], [0], [1], [0, 0, 1, 1], [], []>} : vector<160x96xbf16>, vector<96x64xbf16>, vector<160x64xf32> -> vector<160x64xf32>
    %79 = arith.addf %74, %78 : vector<160x64xf32>
    %c0_36 = arith.constant 0 : index
    %c0_37 = arith.constant 0 : index
    %80 = vector.load %arg7[%c0_36, %c0_37] : memref<1x64xf32, #tpu.memory_space<vmem>>, vector<1x64xf32>
    %81 = vector.broadcast %80 : vector<1x64xf32> to vector<160x64xf32>
    %82 = arith.addf %79, %81 : vector<160x64xf32>
    %cst_38 = arith.constant 0.000000e+00 : f32
    %83 = vector.broadcast %cst_38 : f32 to vector<160x64xf32>
    %84 = arith.maximumf %82, %83 : vector<160x64xf32>
    %85 = vector.broadcast %15 : vector<160x1xf32> to vector<160x64xf32>
    %86 = arith.mulf %84, %85 : vector<160x64xf32>
    %c0_39 = arith.constant 0 : index
    %c0_40 = arith.constant 0 : index
    %87 = vector.load %arg9[%c0_39, %c0_40] : memref<168x64xf32, #tpu.memory_space<vmem>>, vector<160x64xf32>
    tpu.vector_store %arg9[%c0_39, %c0_40], %86 {strides = array<i32>} : memref<168x64xf32, #tpu.memory_space<vmem>>, vector<160x64xf32>,
    %cst_41 = arith.constant 0.000000e+00 : f32
    %88 = vector.broadcast %cst_41 : f32 to vector<8x64xf32>
    %c160 = arith.constant 160 : index
    %c0_42 = arith.constant 0 : index
    %89 = vector.load %arg9[%c160, %c0_42] : memref<168x64xf32, #tpu.memory_space<vmem>>, vector<8x64xf32>
    tpu.vector_store %arg9[%c160, %c0_42], %88 {strides = array<i32>} : memref<168x64xf32, #tpu.memory_space<vmem>>, vector<8x64xf32>,
    %c0_43 = arith.constant 0 : index
    %c0_44 = arith.constant 0 : index
    %90 = tpu.strided_load %arg9[%c0_43, %c0_44] {strides = array<i32: 2, 1>} : memref<168x64xf32, #tpu.memory_space<vmem>>, vector<80x64xf32>
    %c1_45 = arith.constant 1 : index
    %c0_46 = arith.constant 0 : index
    %91 = tpu.strided_load %arg9[%c1_45, %c0_46] {strides = array<i32: 2, 1>} : memref<168x64xf32, #tpu.memory_space<vmem>>, vector<80x64xf32>
    %c2_47 = arith.constant 2 : index
    %c0_48 = arith.constant 0 : index
    %92 = tpu.strided_load %arg9[%c2_47, %c0_48] {strides = array<i32: 2, 1>} : memref<168x64xf32, #tpu.memory_space<vmem>>, vector<80x64xf32>
    %93 = arith.maximumf %90, %91 : vector<80x64xf32>
    %94 = arith.maximumf %93, %92 : vector<80x64xf32>
    %95 = vector.extract_strided_slice %94 {offsets = [0, 0], sizes = [4, 64], strides = [1, 1]} : vector<80x64xf32> to vector<4x64xf32>
    %96 = vector.extract_strided_slice %94 {offsets = [8, 0], sizes = [4, 64], strides = [1, 1]} : vector<80x64xf32> to vector<4x64xf32>
    %97 = vector.extract_strided_slice %94 {offsets = [16, 0], sizes = [4, 64], strides = [1, 1]} : vector<80x64xf32> to vector<4x64xf32>
    %98 = arith.maximumf %95, %96 : vector<4x64xf32>
    %99 = arith.maximumf %98, %97 : vector<4x64xf32>
    %100 = vector.extract_strided_slice %94 {offsets = [16, 0], sizes = [4, 64], strides = [1, 1]} : vector<80x64xf32> to vector<4x64xf32>
    %101 = vector.extract_strided_slice %94 {offsets = [24, 0], sizes = [4, 64], strides = [1, 1]} : vector<80x64xf32> to vector<4x64xf32>
    %102 = vector.extract_strided_slice %94 {offsets = [32, 0], sizes = [4, 64], strides = [1, 1]} : vector<80x64xf32> to vector<4x64xf32>
    %103 = arith.maximumf %100, %101 : vector<4x64xf32>
    %104 = arith.maximumf %103, %102 : vector<4x64xf32>
    %105 = vector.extract_strided_slice %94 {offsets = [32, 0], sizes = [4, 64], strides = [1, 1]} : vector<80x64xf32> to vector<4x64xf32>
    %106 = vector.extract_strided_slice %94 {offsets = [40, 0], sizes = [4, 64], strides = [1, 1]} : vector<80x64xf32> to vector<4x64xf32>
    %107 = vector.extract_strided_slice %94 {offsets = [48, 0], sizes = [4, 64], strides = [1, 1]} : vector<80x64xf32> to vector<4x64xf32>
    %108 = arith.maximumf %105, %106 : vector<4x64xf32>
    %109 = arith.maximumf %108, %107 : vector<4x64xf32>
    %110 = vector.extract_strided_slice %94 {offsets = [48, 0], sizes = [4, 64], strides = [1, 1]} : vector<80x64xf32> to vector<4x64xf32>
    %111 = vector.extract_strided_slice %94 {offsets = [56, 0], sizes = [4, 64], strides = [1, 1]} : vector<80x64xf32> to vector<4x64xf32>
    %112 = vector.extract_strided_slice %94 {offsets = [64, 0], sizes = [4, 64], strides = [1, 1]} : vector<80x64xf32> to vector<4x64xf32>
    %113 = arith.maximumf %110, %111 : vector<4x64xf32>
    %114 = arith.maximumf %113, %112 : vector<4x64xf32>
    %115 = tpu.concatenate %99, %104, %109, %114 in 0 : vector<4x64xf32>, vector<4x64xf32>, vector<4x64xf32>, vector<4x64xf32> -> vector<16x64xf32>
    %c0_49 = arith.constant 0 : index
    %c0_50 = arith.constant 0 : index
    %c0_51 = arith.constant 0 : index
    %116 = vector.load %arg8[%c0_49, %c0_50, %c0_51] : memref<1x16x64xf32, #tpu.memory_space<vmem>>, vector<1x16x64xf32>
    %117 = vector.shape_cast %116 : vector<1x16x64xf32> to vector<16x64xf32>
    %118 = vector.shape_cast %115 : vector<16x64xf32> to vector<1x16x64xf32>
    tpu.vector_store %arg8[%c0_49, %c0_50, %c0_51], %118 {strides = array<i32>} : memref<1x16x64xf32, #tpu.memory_space<vmem>>, vector<1x16x64xf32>,
    return
  }
  func.func @transform_0(%arg0: i32) -> (i32, i32, i32) {
    %c0_i32 = arith.constant 0 : i32
    %c0_i32_0 = arith.constant 0 : i32
    %c0_i32_1 = arith.constant 0 : i32
    return %arg0, %c0_i32, %c0_i32_0 : i32, i32, i32
  }
  func.func @transform_1(%arg0: i32) -> (i32, i32) {
    %c0_i32 = arith.constant 0 : i32
    %c0_i32_0 = arith.constant 0 : i32
    %c0_i32_1 = arith.constant 0 : i32
    return %c0_i32, %c0_i32_0 : i32, i32
  }
  func.func @transform_2(%arg0: i32) -> (i32, i32) {
    %c0_i32 = arith.constant 0 : i32
    %c0_i32_0 = arith.constant 0 : i32
    %c0_i32_1 = arith.constant 0 : i32
    return %c0_i32, %c0_i32_0 : i32, i32
  }
  func.func @transform_3(%arg0: i32) -> (i32, i32, i32) {
    %c0_i32 = arith.constant 0 : i32
    %c0_i32_0 = arith.constant 0 : i32
    %c0_i32_1 = arith.constant 0 : i32
    %c0_i32_2 = arith.constant 0 : i32
    return %c0_i32, %c0_i32_0, %c0_i32_1 : i32, i32, i32
  }
  func.func @transform_4(%arg0: i32) -> (i32, i32) {
    %c0_i32 = arith.constant 0 : i32
    %c0_i32_0 = arith.constant 0 : i32
    %c0_i32_1 = arith.constant 0 : i32
    return %c0_i32, %c0_i32_0 : i32, i32
  }
  func.func @transform_5(%arg0: i32) -> (i32, i32, i32) {
    %c0_i32 = arith.constant 0 : i32
    %c0_i32_0 = arith.constant 0 : i32
    %c0_i32_1 = arith.constant 0 : i32
    %c0_i32_2 = arith.constant 0 : i32
    return %c0_i32, %c0_i32_0, %c0_i32_1 : i32, i32, i32
  }
  func.func @transform_6(%arg0: i32) -> (i32, i32) {
    %c0_i32 = arith.constant 0 : i32
    %c0_i32_0 = arith.constant 0 : i32
    %c0_i32_1 = arith.constant 0 : i32
    return %c0_i32, %c0_i32_0 : i32, i32
  }
  func.func @transform_7(%arg0: i32) -> (i32, i32, i32) {
    %c0_i32 = arith.constant 0 : i32
    %c0_i32_0 = arith.constant 0 : i32
    %c0_i32_1 = arith.constant 0 : i32
    return %arg0, %c0_i32, %c0_i32_0 : i32, i32, i32
  }
}

</mosaic_0001>

<llo_original>
// kernel: conv_tokenizer_forward.1
$region0: #{conv_tokenizer_forward.1}
  #allocation0 [shape = 'u32[]', space=smem, size = 0x4, offset = 0x4, fixed_abs, tag = 'smem constant byte address 0x4 - core index']
  #allocation1 [shape = 'u32[72,128]{1,0:T(1,128)}', space=vmem, size = 0x9000, scoped, tag = 'internal scratch']
  #allocation2 [shape = 'f32[168,64]{1,0:T(8,128)}', space=vmem, size = 0x15000, scoped, tag = 'scratch operand']
  %s0 = inlined_call_operand.vmem [shape: bf16[2,160,32], index: 0, kind: input, shape index: {}]
  %s1 = inlined_call_operand.vmem [shape: bf16[32,32], index: 1, kind: input, shape index: {}]
  %s2 = inlined_call_operand.vmem [shape: f32[1,32], index: 2, kind: input, shape index: {}]
  %s3 = inlined_call_operand.vmem [shape: bf16[3,96,32], index: 3, kind: input, shape index: {}]
  %s4 = inlined_call_operand.vmem [shape: f32[1,32], index: 4, kind: input, shape index: {}]
  %s5 = inlined_call_operand.vmem [shape: bf16[3,96,64], index: 5, kind: input, shape index: {}]
  %s6 = inlined_call_operand.vmem [shape: f32[1,64], index: 6, kind: input, shape index: {}]
  %s7 = inlined_call_operand.hbm [shape: f32[2,16,64], index: 7, kind: output, shape index: {}]
  %s8 = sld [smem:[#allocation0]]
  $region61: #{conv_tokenizer_forward.1} parent=0
    _
  %s10 = ssub.s32 1, %s8
  %s11 = scalar_select 0, %s10, %s8
  $region1: #{conv_tokenizer_forward.1} parent=0
    #allocation3 [shape = 'u8[16384]{0}', space=vmem, size = 0x4000, scoped, tag = 'output window, operand 0']
    #allocation4 [shape = 's32[2]{0}', space=sflag, size = 0x8, scoped, tag = 'scoped memory for conv_tokenizer_forward.1']
    %12 = vsyncpa [#allocation4], 0
    %s13 = scalar_lea.sflag [#allocation4], 1
    %14 = vsyncpa %s13, 0
    loop: start=0, step=1, limit=4
    $region2: #{conv_tokenizer_forward.1} parent=1 // loop_pre_header
      _
    $region3: #{conv_tokenizer_forward.1} parent=1 // loop_header
      %s16 = sphi 0, %s20
      %p17 = scmp.ge.s32.totalorder %s16, 4
      %s26 = sphi 0, %s28
      %s29 = sphi 0, %s26
      %s30 = sphi 0, %s29
      %s46 = sphi 0, %s30
      %s50 = sphi 0, %s50
      %s52 = sphi 0, %s50
      %s53 = sphi 0, %s52
      %s67 = sphi 0, %s53
      %s71 = sphi 0, %s71
      %s73 = sphi 0, %s71
      %s74 = sphi 0, %s73
      %s88 = sphi 0, %s74
      %s92 = sphi 0, %s92
      %s94 = sphi 0, %s92
      %s95 = sphi 0, %s94
      %s109 = sphi 0, %s95
      %s113 = sphi 0, %s113
      %s115 = sphi 0, %s113
      %s116 = sphi 0, %s115
      %s130 = sphi 0, %s116
      %s134 = sphi 0, %s134
      %s136 = sphi 0, %s134
      %s137 = sphi 0, %s136
      %s151 = sphi 0, %s137
      %s155 = sphi 0, %s155
      %s157 = sphi 0, %s155
      %s158 = sphi 0, %s157
      %s172 = sphi 0, %s158
      %s178 = sphi 0, %s180
      %s181 = sphi 0, %s178
      %s182 = sphi 0, %s181
      %s198 = sphi 0, %s182
    $region4: #{conv_tokenizer_forward.1} parent=1 // loop_header_branch
      %19 = sbr.rel (%p17) target = $region8
    $region5: #{conv_tokenizer_forward.1} parent=1 // loop_body
      %s21 = ssub.s32 %s16, 1
      %s22 = ssub.s32 %s16, 2
      %s23 = sadd.s32 %s16, 1
      %s24 = ssub.s32 %s16, %s23
      %p25 = scmp.eq.s32.totalorder %s24, 0
      %s27 = sadd.s32 %s26, 1
      %s28 = scalar_select %p25, %s26, %s27
      %p31 = pneg %p25
      %p32 = scmp.eq.s32.totalorder %s16, 1
      %p33 = por %p31, %p32
      %p34 = scmp.ne.s32.totalorder %s26, %s29
      %p35 = scmp.eq.s32.totalorder %s16, 0
      %p36 = por %p34, %p35
      %p37 = scmp.ne.s32.totalorder %s26, %s29
      %p38 = scmp.eq.s32.totalorder %s21, 1
      %p39 = por %p37, %p38
      %p40 = scmp.ne.s32.totalorder %s29, %s30
      %p41 = scmp.eq.s32.totalorder %s21, 0
      %p42 = por %p40, %p41
      %p43 = scmp.ne.s32.totalorder %s29, %s30
      %p44 = scmp.eq.s32.totalorder %s22, 1
      %p45 = por %p43, %p44
      %p47 = scmp.ne.s32.totalorder %s30, %s46
      %p48 = scmp.eq.s32.totalorder %s22, 0
      %p49 = por %p47, %p48
      %s51 = sadd.s32 %s50, 1
      %p54 = scmp.eq.s32.totalorder %s16, 1
      %p55 = scmp.ne.s32.totalorder %s50, %s52
      %p56 = scmp.eq.s32.totalorder %s16, 0
      %p57 = por %p55, %p56
      %p58 = scmp.ne.s32.totalorder %s50, %s52
      %p59 = scmp.eq.s32.totalorder %s21, 1
      %p60 = por %p58, %p59
      %p61 = scmp.ne.s32.totalorder %s52, %s53
      %p62 = scmp.eq.s32.totalorder %s21, 0
      %p63 = por %p61, %p62
      %p64 = scmp.ne.s32.totalorder %s52, %s53
      %p65 = scmp.eq.s32.totalorder %s22, 1
      %p66 = por %p64, %p65
      %p68 = scmp.ne.s32.totalorder %s53, %s67
      %p69 = scmp.eq.s32.totalorder %s22, 0
      %p70 = por %p68, %p69
      %s72 = sadd.s32 %s71, 1
      %p75 = scmp.eq.s32.totalorder %s16, 1
      %p76 = scmp.ne.s32.totalorder %s71, %s73
      %p77 = scmp.eq.s32.totalorder %s16, 0
      %p78 = por %p76, %p77
      %p79 = scmp.ne.s32.totalorder %s71, %s73
      %p80 = scmp.eq.s32.totalorder %s21, 1
      %p81 = por %p79, %p80
      %p82 = scmp.ne.s32.totalorder %s73, %s74
      %p83 = scmp.eq.s32.totalorder %s21, 0
      %p84 = por %p82, %p83
      %p85 = scmp.ne.s32.totalorder %s73, %s74
      %p86 = scmp.eq.s32.totalorder %s22, 1
      %p87 = por %p85, %p86
      %p89 = scmp.ne.s32.totalorder %s74, %s88
      %p90 = scmp.eq.s32.totalorder %s22, 0
      %p91 = por %p89, %p90
      %s93 = sadd.s32 %s92, 1
      %p96 = scmp.eq.s32.totalorder %s16, 1
      %p97 = scmp.ne.s32.totalorder %s92, %s94
      %p98 = scmp.eq.s32.totalorder %s16, 0
      %p99 = por %p97, %p98
      %p100 = scmp.ne.s32.totalorder %s92, %s94
      %p101 = scmp.eq.s32.totalorder %s21, 1
      %p102 = por %p100, %p101
      %p103 = scmp.ne.s32.totalorder %s94, %s95
      %p104 = scmp.eq.s32.totalorder %s21, 0
      %p105 = por %p103, %p104
      %p106 = scmp.ne.s32.totalorder %s94, %s95
      %p107 = scmp.eq.s32.totalorder %s22, 1
      %p108 = por %p106, %p107
      %p110 = scmp.ne.s32.totalorder %s95, %s109
      %p111 = scmp.eq.s32.totalorder %s22, 0
      %p112 = por %p110, %p111
      %s114 = sadd.s32 %s113, 1
      %p117 = scmp.eq.s32.totalorder %s16, 1
      %p118 = scmp.ne.s32.totalorder %s113, %s115
      %p119 = scmp.eq.s32.totalorder %s16, 0
      %p120 = por %p118, %p119
      %p121 = scmp.ne.s32.totalorder %s113, %s115
      %p122 = scmp.eq.s32.totalorder %s21, 1
      %p123 = por %p121, %p122
      %p124 = scmp.ne.s32.totalorder %s115, %s116
      %p125 = scmp.eq.s32.totalorder %s21, 0
      %p126 = por %p124, %p125
      %p127 = scmp.ne.s32.totalorder %s115, %s116
      %p128 = scmp.eq.s32.totalorder %s22, 1
      %p129 = por %p127, %p128
      %p131 = scmp.ne.s32.totalorder %s116, %s130
      %p132 = scmp.eq.s32.totalorder %s22, 0
      %p133 = por %p131, %p132
      %s135 = sadd.s32 %s134, 1
      %p138 = scmp.eq.s32.totalorder %s16, 1
      %p139 = scmp.ne.s32.totalorder %s134, %s136
      %p140 = scmp.eq.s32.totalorder %s16, 0
      %p141 = por %p139, %p140
      %p142 = scmp.ne.s32.totalorder %s134, %s136
      %p143 = scmp.eq.s32.totalorder %s21, 1
      %p144 = por %p142, %p143
      %p145 = scmp.ne.s32.totalorder %s136, %s137
      %p146 = scmp.eq.s32.totalorder %s21, 0
      %p147 = por %p145, %p146
      %p148 = scmp.ne.s32.totalorder %s136, %s137
      %p149 = scmp.eq.s32.totalorder %s22, 1
      %p150 = por %p148, %p149
      %p152 = scmp.ne.s32.totalorder %s137, %s151
      %p153 = scmp.eq.s32.totalorder %s22, 0
      %p154 = por %p152, %p153
      %s156 = sadd.s32 %s155, 1
      %p159 = scmp.eq.s32.totalorder %s16, 1
      %p160 = scmp.ne.s32.totalorder %s155, %s157
      %p161 = scmp.eq.s32.totalorder %s16, 0
      %p162 = por %p160, %p161
      %p163 = scmp.ne.s32.totalorder %s155, %s157
      %p164 = scmp.eq.s32.totalorder %s21, 1
      %p165 = por %p163, %p164
      %p166 = scmp.ne.s32.totalorder %s157, %s158
      %p167 = scmp.eq.s32.totalorder %s21, 0
      %p168 = por %p166, %p167
      %p169 = scmp.ne.s32.totalorder %s157, %s158
      %p170 = scmp.eq.s32.totalorder %s22, 1
      %p171 = por %p169, %p170
      %p173 = scmp.ne.s32.totalorder %s158, %s172
      %p174 = scmp.eq.s32.totalorder %s22, 0
      %p175 = por %p173, %p174
      %s176 = ssub.s32 %s16, %s23
      %p177 = scmp.eq.s32.totalorder %s176, 0
      %s179 = sadd.s32 %s178, 1
      %s180 = scalar_select %p177, %s178, %s179
      %p183 = pneg %p177
      %p184 = scmp.eq.s32.totalorder %s16, 1
      %p185 = por %p183, %p184
      %p186 = scmp.ne.s32.totalorder %s178, %s181
      %p187 = scmp.eq.s32.totalorder %s16, 0
      %p188 = por %p186, %p187
      %p189 = scmp.ne.s32.totalorder %s178, %s181
      %p190 = scmp.eq.s32.totalorder %s21, 1
      %p191 = por %p189, %p190
      %p192 = scmp.ne.s32.totalorder %s181, %s182
      %p193 = scmp.eq.s32.totalorder %s21, 0
      %p194 = por %p192, %p193
      %p195 = scmp.ne.s32.totalorder %s181, %s182
      %p196 = scmp.eq.s32.totalorder %s22, 1
      %p197 = por %p195, %p196
      %p199 = scmp.ne.s32.totalorder %s182, %s198
      %p200 = scmp.eq.s32.totalorder %s22, 0
      %p201 = por %p199, %p200
      %p202 = scmp.le.s32.totalorder 1, %s16
      %p203 = scmp.lt.s32.totalorder %s16, 3
      %p204 = pnand %p202, %p203
      %p205 = pneg %p204
      // Predicated region
      $region9: #{conv_tokenizer_forward.1} parent=5 // pred_check
        _
      $region10: #{conv_tokenizer_forward.1} parent=5 // pred_check_branch
        %207 = sbr.rel (%p204) target = $region12
      $region11: #{conv_tokenizer_forward.1} parent=5 // pred_region
        %s208 = ssub.s32 %s16, 1
        // Predicated region
        $region13: #{conv_tokenizer_forward.1} parent=11 // pred_check
          %p209 = pneg %p63
        $region14: #{conv_tokenizer_forward.1} parent=11 // pred_check_branch
          %211 = sbr.rel (%p209) target = $region16
        $region15: #{conv_tokenizer_forward.1} parent=11 // pred_region
          _
        $region16: #{conv_tokenizer_forward.1} parent=11 // pred_fallthru
          _
        // Predicated region
        $region17: #{conv_tokenizer_forward.1} parent=11 // pred_check
          %p212 = pneg %p84
        $region18: #{conv_tokenizer_forward.1} parent=11 // pred_check_branch
          %214 = sbr.rel (%p212) target = $region20
        $region19: #{conv_tokenizer_forward.1} parent=11 // pred_region
          _
        $region20: #{conv_tokenizer_forward.1} parent=11 // pred_fallthru
          _
        // Predicated region
        $region21: #{conv_tokenizer_forward.1} parent=11 // pred_check
          %p215 = pneg %p105
        $region22: #{conv_tokenizer_forward.1} parent=11 // pred_check_branch
          %217 = sbr.rel (%p215) target = $region24
        $region23: #{conv_tokenizer_forward.1} parent=11 // pred_region
          _
        $region24: #{conv_tokenizer_forward.1} parent=11 // pred_fallthru
          _
        // Predicated region
        $region25: #{conv_tokenizer_forward.1} parent=11 // pred_check
          %p218 = pneg %p126
        $region26: #{conv_tokenizer_forward.1} parent=11 // pred_check_branch
          %220 = sbr.rel (%p218) target = $region28
        $region27: #{conv_tokenizer_forward.1} parent=11 // pred_region
          _
        $region28: #{conv_tokenizer_forward.1} parent=11 // pred_fallthru
          _
        // Predicated region
        $region29: #{conv_tokenizer_forward.1} parent=11 // pred_check
          %p221 = pneg %p147
        $region30: #{conv_tokenizer_forward.1} parent=11 // pred_check_branch
          %223 = sbr.rel (%p221) target = $region32
        $region31: #{conv_tokenizer_forward.1} parent=11 // pred_region
          _
        $region32: #{conv_tokenizer_forward.1} parent=11 // pred_fallthru
          _
        // Predicated region
        $region33: #{conv_tokenizer_forward.1} parent=11 // pred_check
          %p224 = pneg %p168
        $region34: #{conv_tokenizer_forward.1} parent=11 // pred_check_branch
          %226 = sbr.rel (%p224) target = $region36
        $region35: #{conv_tokenizer_forward.1} parent=11 // pred_region
          _
        $region36: #{conv_tokenizer_forward.1} parent=11 // pred_fallthru
          _
      $region12: #{conv_tokenizer_forward.1} parent=5 // pred_fallthru
        _
      %p227 = scmp.lt.s32.totalorder %s16, 2
      // Predicated region
      $region37: #{conv_tokenizer_forward.1} parent=5 // pred_check
        %p228 = pneg %p227
      $region38: #{conv_tokenizer_forward.1} parent=5 // pred_check_branch
        %230 = sbr.rel (%p228) target = $region40
      $region39: #{conv_tokenizer_forward.1} parent=5 // pred_region
        // Predicated region
        $region41: #{conv_tokenizer_forward.1} parent=39 // pred_check
          %p231 = pneg %p36
        $region42: #{conv_tokenizer_forward.1} parent=39 // pred_check_branch
          %233 = sbr.rel (%p231) target = $region44
        $region43: #{conv_tokenizer_forward.1} parent=39 // pred_region
          %p234 = scmp.lt.s32.totalorder %s16, 1
          %s235 = scalar_select %p234, %s16, 1
          %s236 = smul.addr %s235, 20
          %s237 = smul.addr %s236, 4
          %s238 = scalar_lea.vmem %s0, %s237
        $region44: #{conv_tokenizer_forward.1} parent=39 // pred_fallthru
          _
      $region40: #{conv_tokenizer_forward.1} parent=5 // pred_fallthru
        _
      %p239 = scmp.le.s32.totalorder 1, %s16
      %p240 = scmp.lt.s32.totalorder %s16, 3
      %p241 = pnand %p239, %p240
      %p242 = pneg %p241
      // Predicated region
      $region45: #{conv_tokenizer_forward.1} parent=5 // pred_check
        _
      $region46: #{conv_tokenizer_forward.1} parent=5 // pred_check_branch
        %244 = sbr.rel (%p241) target = $region48
      $region47: #{conv_tokenizer_forward.1} parent=5 // pred_region
        %s245 = ssub.s32 %s16, 1
        %p246 = scmp.lt.s32.totalorder %s21, 1
        %s247 = scalar_select %p246, %s21, 1
        %s248 = smul.addr %s247, 20
        %s249 = smul.addr %s248, 4
        %s250 = scalar_lea.vmem %s0, %s249
        %p251 = pneg %p42
        %p252 = pneg %p39
        %p253 = pneg %p63
        %p254 = pneg %p60
        %p255 = pneg %p84
        %p256 = pneg %p81
        %p257 = pneg %p105
        %p258 = pneg %p102
        %p259 = pneg %p126
        %p260 = pneg %p123
        %p261 = pneg %p147
        %p262 = pneg %p144
        %p263 = pneg %p168
        %p264 = pneg %p165
        %p265 = pneg %p194
        %p266 = pneg %p191
        %s267 = sand.u32 %s181, 1
        %s268 = scalar_lea.sflag [#allocation4], %s267
        %s269 = sand.u32 %s181, 1
        %s270 = smul.addr %s269, 16
        %s271 = scalar_lea.vmem [#allocation3], %s270
        %p272 = scmp.lt.s32.totalorder %s21, 1
        %s273 = scalar_select %p272, %s21, 1
        %s274 = smul.addr %s273, 20
        %s275 = smul.addr %s274, 4
        %s276 = scalar_lea.vmem %s0, %s275
        %v278 = vlaneseq
        %v279 = vshrl.u32 %v278, 7
        %v280 = vadd.s32 %v279, 8
        %v281 = vadd.s32 %v279, 16
        %v282 = vadd.s32 %v279, 24
        %v283 = vadd.s32 %v279, 32
        %v284 = vadd.s32 %v279, 40
        %v285 = vadd.s32 %v279, 48
        %v286 = vadd.s32 %v279, 56
        %v287 = vadd.s32 %v279, 64
        %v288 = vadd.s32 %v279, 72
        %v289 = vadd.s32 %v279, 80
        %v290 = vadd.s32 %v279, 88
        %v291 = vadd.s32 %v279, 96
        %v292 = vadd.s32 %v279, 104
        %v293 = vadd.s32 %v279, 112
        %v294 = vadd.s32 %v279, 120
        %v295 = vadd.s32 %v279, 128
        %v296 = vadd.s32 %v279, 136
        %v297 = vadd.s32 %v279, 144
        %v298 = vadd.s32 %v279, 152
        %v299 = vand.u32 %v279, 15
        %v300 = vand.u32 %v280, 15
        %v301 = vand.u32 %v281, 15
        %v302 = vand.u32 %v282, 15
        %v303 = vand.u32 %v283, 15
        %v304 = vand.u32 %v284, 15
        %v305 = vand.u32 %v285, 15
        %v306 = vand.u32 %v286, 15
        %v307 = vand.u32 %v287, 15
        %v308 = vand.u32 %v288, 15
        %v309 = vand.u32 %v289, 15
        %v310 = vand.u32 %v290, 15
        %v311 = vand.u32 %v291, 15
        %v312 = vand.u32 %v292, 15
        %v313 = vand.u32 %v293, 15
        %v314 = vand.u32 %v294, 15
        %v315 = vand.u32 %v295, 15
        %v316 = vand.u32 %v296, 15
        %v317 = vand.u32 %v297, 15
        %v318 = vand.u32 %v298, 15
        %vm319 = vcmp.ge.s32.totalorder %v299, 1
        %vm320 = vcmp.ge.s32.totalorder %v300, 1
        %vm321 = vcmp.ge.s32.totalorder %v301, 1
        %vm322 = vcmp.ge.s32.totalorder %v302, 1
        %vm323 = vcmp.ge.s32.totalorder %v303, 1
        %vm324 = vcmp.ge.s32.totalorder %v304, 1
        %vm325 = vcmp.ge.s32.totalorder %v305, 1
        %vm326 = vcmp.ge.s32.totalorder %v306, 1
        %vm327 = vcmp.ge.s32.totalorder %v307, 1
        %vm328 = vcmp.ge.s32.totalorder %v308, 1
        %vm329 = vcmp.ge.s32.totalorder %v309, 1
        %vm330 = vcmp.ge.s32.totalorder %v310, 1
        %vm331 = vcmp.ge.s32.totalorder %v311, 1
        %vm332 = vcmp.ge.s32.totalorder %v312, 1
        %vm333 = vcmp.ge.s32.totalorder %v313, 1
        %vm334 = vcmp.ge.s32.totalorder %v314, 1
        %vm335 = vcmp.ge.s32.totalorder %v315, 1
        %vm336 = vcmp.ge.s32.totalorder %v316, 1
        %vm337 = vcmp.ge.s32.totalorder %v317, 1
        %vm338 = vcmp.ge.s32.totalorder %v318, 1
        %vm339 = vcmp.le.s32.totalorder %v299, 8
        %vm340 = vcmp.le.s32.totalorder %v300, 8
        %vm341 = vcmp.le.s32.totalorder %v301, 8
        %vm342 = vcmp.le.s32.totalorder %v302, 8
        %vm343 = vcmp.le.s32.totalorder %v303, 8
        %vm344 = vcmp.le.s32.totalorder %v304, 8
        %vm345 = vcmp.le.s32.totalorder %v305, 8
        %vm346 = vcmp.le.s32.totalorder %v306, 8
        %vm347 = vcmp.le.s32.totalorder %v307, 8
        %vm348 = vcmp.le.s32.totalorder %v308, 8
        %vm349 = vcmp.le.s32.totalorder %v309, 8
        %vm350 = vcmp.le.s32.totalorder %v310, 8
        %vm351 = vcmp.le.s32.totalorder %v311, 8
        %vm352 = vcmp.le.s32.totalorder %v312, 8
        %vm353 = vcmp.le.s32.totalorder %v313, 8
        %vm354 = vcmp.le.s32.totalorder %v314, 8
        %vm355 = vcmp.le.s32.totalorder %v315, 8
        %vm356 = vcmp.le.s32.totalorder %v316, 8
        %vm357 = vcmp.le.s32.totalorder %v317, 8
        %vm358 = vcmp.le.s32.totalorder %v318, 8
        %vm359 = vmand %vm319, %vm339
        %vm360 = vmand %vm320, %vm340
        %vm361 = vmand %vm321, %vm341
        %vm362 = vmand %vm322, %vm342
        %vm363 = vmand %vm323, %vm343
        %vm364 = vmand %vm324, %vm344
        %vm365 = vmand %vm325, %vm345
        %vm366 = vmand %vm326, %vm346
        %vm367 = vmand %vm327, %vm347
        %vm368 = vmand %vm328, %vm348
        %vm369 = vmand %vm329, %vm349
        %vm370 = vmand %vm330, %vm350
        %vm371 = vmand %vm331, %vm351
        %vm372 = vmand %vm332, %vm352
        %vm373 = vmand %vm333, %vm353
        %vm374 = vmand %vm334, %vm354
        %vm375 = vmand %vm335, %vm355
        %vm376 = vmand %vm336, %vm356
        %vm377 = vmand %vm337, %vm357
        %vm378 = vmand %vm338, %vm358
        %vm379 = vcmp.ge.s32.totalorder %v279, 16
        %vm380 = vcmp.ge.s32.totalorder %v280, 16
        %vm381 = vcmp.ge.s32.totalorder %v281, 16
        %vm382 = vcmp.ge.s32.totalorder %v282, 16
        %vm383 = vcmp.ge.s32.totalorder %v283, 16
        %vm384 = vcmp.ge.s32.totalorder %v284, 16
        %vm385 = vcmp.ge.s32.totalorder %v285, 16
        %vm386 = vcmp.ge.s32.totalorder %v286, 16
        %vm387 = vcmp.ge.s32.totalorder %v287, 16
        %vm388 = vcmp.ge.s32.totalorder %v288, 16
        %vm389 = vcmp.ge.s32.totalorder %v289, 16
        %vm390 = vcmp.ge.s32.totalorder %v290, 16
        %vm391 = vcmp.ge.s32.totalorder %v291, 16
        %vm392 = vcmp.ge.s32.totalorder %v292, 16
        %vm393 = vcmp.ge.s32.totalorder %v293, 16
        %vm394 = vcmp.ge.s32.totalorder %v294, 16
        %vm395 = vcmp.ge.s32.totalorder %v295, 16
        %vm396 = vcmp.ge.s32.totalorder %v296, 16
        %vm397 = vcmp.ge.s32.totalorder %v297, 16
        %vm398 = vcmp.ge.s32.totalorder %v298, 16
        %vm399 = vmand %vm359, %vm379
        %vm400 = vmand %vm360, %vm380
        %vm401 = vmand %vm361, %vm381
        %vm402 = vmand %vm362, %vm382
        %vm403 = vmand %vm363, %vm383
        %vm404 = vmand %vm364, %vm384
        %vm405 = vmand %vm365, %vm385
        %vm406 = vmand %vm366, %vm386
        %vm407 = vmand %vm367, %vm387
        %vm408 = vmand %vm368, %vm388
        %vm409 = vmand %vm369, %vm389
        %vm410 = vmand %vm370, %vm390
        %vm411 = vmand %vm371, %vm391
        %vm412 = vmand %vm372, %vm392
        %vm413 = vmand %vm373, %vm393
        %vm414 = vmand %vm374, %vm394
        %vm415 = vmand %vm375, %vm395
        %vm416 = vmand %vm376, %vm396
        %vm417 = vmand %vm377, %vm397
        %vm418 = vmand %vm378, %vm398
        %vm419 = vcmp.lt.s32.totalorder %v279, 144
        %vm420 = vcmp.lt.s32.totalorder %v280, 144
        %vm421 = vcmp.lt.s32.totalorder %v281, 144
        %vm422 = vcmp.lt.s32.totalorder %v282, 144
        %vm423 = vcmp.lt.s32.totalorder %v283, 144
        %vm424 = vcmp.lt.s32.totalorder %v284, 144
        %vm425 = vcmp.lt.s32.totalorder %v285, 144
        %vm426 = vcmp.lt.s32.totalorder %v286, 144
        %vm427 = vcmp.lt.s32.totalorder %v287, 144
        %vm428 = vcmp.lt.s32.totalorder %v288, 144
        %vm429 = vcmp.lt.s32.totalorder %v289, 144
        %vm430 = vcmp.lt.s32.totalorder %v290, 144
        %vm431 = vcmp.lt.s32.totalorder %v291, 144
        %vm432 = vcmp.lt.s32.totalorder %v292, 144
        %vm433 = vcmp.lt.s32.totalorder %v293, 144
        %vm434 = vcmp.lt.s32.totalorder %v294, 144
        %vm435 = vcmp.lt.s32.totalorder %v295, 144
        %vm436 = vcmp.lt.s32.totalorder %v296, 144
        %vm437 = vcmp.lt.s32.totalorder %v297, 144
        %vm438 = vcmp.lt.s32.totalorder %v298, 144
        %vm439 = vmand %vm399, %vm419
        %vm440 = vmand %vm400, %vm420
        %vm441 = vmand %vm401, %vm421
        %vm442 = vmand %vm402, %vm422
        %vm443 = vmand %vm403, %vm423
        %vm444 = vmand %vm404, %vm424
        %vm445 = vmand %vm405, %vm425
        %vm446 = vmand %vm406, %vm426
        %vm447 = vmand %vm407, %vm427
        %vm448 = vmand %vm408, %vm428
        %vm449 = vmand %vm409, %vm429
        %vm450 = vmand %vm410, %vm430
        %vm451 = vmand %vm411, %vm431
        %vm452 = vmand %vm412, %vm432
        %vm453 = vmand %vm413, %vm433
        %vm454 = vmand %vm414, %vm434
        %vm455 = vmand %vm415, %vm435
        %vm456 = vmand %vm416, %vm436
        %vm457 = vmand %vm417, %vm437
        %vm458 = vmand %vm418, %vm438
        %v459 = vsel %vm439, 1, 0
        %v460 = vsel %vm440, 1, 0
        %v461 = vsel %vm441, 1, 0
        %v462 = vsel %vm442, 1, 0
        %v463 = vsel %vm443, 1, 0
        %v464 = vsel %vm444, 1, 0
        %v465 = vsel %vm445, 1, 0
        %v466 = vsel %vm446, 1, 0
        %v467 = vsel %vm447, 1, 0
        %v468 = vsel %vm448, 1, 0
        %v469 = vsel %vm449, 1, 0
        %v470 = vsel %vm450, 1, 0
        %v471 = vsel %vm451, 1, 0
        %v472 = vsel %vm452, 1, 0
        %v473 = vsel %vm453, 1, 0
        %v474 = vsel %vm454, 1, 0
        %v475 = vsel %vm455, 1, 0
        %v476 = vsel %vm456, 1, 0
        %v477 = vsel %vm457, 1, 0
        %v478 = vsel %vm458, 1, 0
        %v479 = vcvt.s32.f32 %v459
        %v480 = vcvt.s32.f32 %v460
        %v481 = vcvt.s32.f32 %v461
        %v482 = vcvt.s32.f32 %v462
        %v483 = vcvt.s32.f32 %v463
        %v484 = vcvt.s32.f32 %v464
        %v485 = vcvt.s32.f32 %v465
        %v486 = vcvt.s32.f32 %v466
        %v487 = vcvt.s32.f32 %v467
        %v488 = vcvt.s32.f32 %v468
        %v489 = vcvt.s32.f32 %v469
        %v490 = vcvt.s32.f32 %v470
        %v491 = vcvt.s32.f32 %v471
        %v492 = vcvt.s32.f32 %v472
        %v493 = vcvt.s32.f32 %v473
        %v494 = vcvt.s32.f32 %v474
        %v495 = vcvt.s32.f32 %v475
        %v496 = vcvt.s32.f32 %v476
        %v497 = vcvt.s32.f32 %v477
        %v498 = vcvt.s32.f32 %v478
        %v499 = vld [vmem:[%s276] sm:$0xf]
        %v500 = vld [vmem:[%s276 + $0x4] sm:$0xf]
        %v501 = vld [vmem:[%s276 + $0x8] sm:$0xf]
        %v502 = vld [vmem:[%s276 + $0xc] sm:$0xf]
        %v503 = vld [vmem:[%s276 + $0x10] sm:$0xf]
        %v504 = vld [vmem:[%s276 + $0x14] sm:$0xf]
        %v505 = vld [vmem:[%s276 + $0x18] sm:$0xf]
        %v506 = vld [vmem:[%s276 + $0x1c] sm:$0xf]
        %v507 = vld [vmem:[%s276 + $0x20] sm:$0xf]
        %v508 = vld [vmem:[%s276 + $0x24] sm:$0xf]
        %v509 = vld [vmem:[%s276 + $0x28] sm:$0xf]
        %v510 = vld [vmem:[%s276 + $0x2c] sm:$0xf]
        %v511 = vld [vmem:[%s276 + $0x30] sm:$0xf]
        %v512 = vld [vmem:[%s276 + $0x34] sm:$0xf]
        %v513 = vld [vmem:[%s276 + $0x38] sm:$0xf]
        %v514 = vld [vmem:[%s276 + $0x3c] sm:$0xf]
        %v515 = vld [vmem:[%s276 + $0x40] sm:$0xf]
        %v516 = vld [vmem:[%s276 + $0x44] sm:$0xf]
        %v517 = vld [vmem:[%s276 + $0x48] sm:$0xf]
        %v518 = vld [vmem:[%s276 + $0x4c] sm:$0xf]
        %v519 = vld [vmem:[%s1] sm:$0xf]
        %v520 = vld [vmem:[%s1 + $0x4] sm:$0xf]
        %v521 = vld [vmem:[%s1 + $0x8] sm:$0xf]
        %v522 = vld [vmem:[%s1 + $0xc] sm:$0xf]
        %v523 = vld [vmem:[%s2] sm:$0x1]
        %v525 = vperm.slane %v523, 0
        %v547 = vunpack.c.l.b16 %v499
        %v548 = vunpack.c.l.b16 %v500
        %v549 = vunpack.c.l.b16 %v501
        %v550 = vunpack.c.l.b16 %v502
        %v551 = vunpack.c.l.b16 %v503
        %v552 = vunpack.c.l.b16 %v504
        %v553 = vunpack.c.l.b16 %v505
        %v554 = vunpack.c.l.b16 %v506
        %v555 = vunpack.c.l.b16 %v507
        %v556 = vunpack.c.l.b16 %v508
        %v557 = vunpack.c.l.b16 %v509
        %v558 = vunpack.c.l.b16 %v510
        %v559 = vunpack.c.l.b16 %v511
        %v560 = vunpack.c.l.b16 %v512
        %v561 = vunpack.c.l.b16 %v513
        %v562 = vunpack.c.l.b16 %v514
        %v563 = vunpack.c.l.b16 %v515
        %v564 = vunpack.c.l.b16 %v516
        %v565 = vunpack.c.l.b16 %v517
        %v566 = vunpack.c.l.b16 %v518
        %v567 = vpack.c.b16 %v548, %v547
        %v568 = vpack.c.b16 %v550, %v549
        %v569 = vpack.c.b16 %v552, %v551
        %v570 = vpack.c.b16 %v554, %v553
        %v571 = vpack.c.b16 %v556, %v555
        %v572 = vpack.c.b16 %v558, %v557
        %v573 = vpack.c.b16 %v560, %v559
        %v574 = vpack.c.b16 %v562, %v561
        %v575 = vpack.c.b16 %v564, %v563
        %v576 = vpack.c.b16 %v566, %v565
        %v581 = vunpack.c.l.b16 %v519
        %v582 = vunpack.c.l.b16 %v520
        %v583 = vunpack.c.l.b16 %v521
        %v584 = vunpack.c.l.b16 %v522
        %v585 = vpack.c.b16 %v582, %v581
        %v586 = vpack.c.b16 %v584, %v583
        %vm589 = vcmask 261120
        %v591 = vsel %vm589, %v567, 0
        %v594 = vsel %vm589, %v568, 0
        %v597 = vsel %vm589, %v569, 0
        %v600 = vsel %vm589, %v570, 0
        %v603 = vsel %vm589, %v571, 0
        %v606 = vsel %vm589, %v572, 0
        %v609 = vsel %vm589, %v573, 0
        %v612 = vsel %vm589, %v574, 0
        %v615 = vsel %vm589, %v575, 0
        %v618 = vsel %vm589, %v576, 0
        %620 = vmatpush.bf16.msra.mxu0 0
        %621 = vmatpush.bf16.msra.mxu0 0
        %622 = vmatpush.bf16.msra.mxu0 0
        %623 = vmatpush.bf16.msra.mxu0 0
        %624 = vmatpush.bf16.msra.mxu0 0
        %625 = vmatpush.bf16.msra.mxu0 0
        %626 = vmatpush.bf16.msra.mxu0 %v586
        %627 = vmatpush.bf16.msra.mxu0 %v585
        %628 = vmatmul.bf16.gmra.mxu0 %v591
        %v629 = vpop.f32.mrf.mxu0
        %v630 = vadd.f32 %v525, %v629
        %v631 = vpop.f32.mrf.mxu0
        %v632 = vadd.f32 %v525, %v631
        %633 = vmatmul.bf16.gmra.mxu0 %v594
        %v634 = vpop.f32.mrf.mxu0
        %v635 = vadd.f32 %v525, %v634
        %v636 = vpop.f32.mrf.mxu0
        %v637 = vadd.f32 %v525, %v636
        %638 = vmatmul.bf16.gmra.mxu0 %v597
        %v639 = vpop.f32.mrf.mxu0
        %v640 = vadd.f32 %v525, %v639
        %v641 = vpop.f32.mrf.mxu0
        %v642 = vadd.f32 %v525, %v641
        %643 = vmatmul.bf16.gmra.mxu0 %v600
        %v644 = vpop.f32.mrf.mxu0
        %v645 = vadd.f32 %v525, %v644
        %v646 = vpop.f32.mrf.mxu0
        %v647 = vadd.f32 %v525, %v646
        %648 = vmatmul.bf16.gmra.mxu0 %v603
        %v649 = vpop.f32.mrf.mxu0
        %v650 = vadd.f32 %v525, %v649
        %v651 = vpop.f32.mrf.mxu0
        %v652 = vadd.f32 %v525, %v651
        %653 = vmatmul.bf16.gmra.mxu0 %v606
        %v654 = vpop.f32.mrf.mxu0
        %v655 = vadd.f32 %v525, %v654
        %v656 = vpop.f32.mrf.mxu0
        %v657 = vadd.f32 %v525, %v656
        %658 = vmatmul.bf16.gmra.mxu0 %v609
        %v659 = vpop.f32.mrf.mxu0
        %v660 = vadd.f32 %v525, %v659
        %v661 = vpop.f32.mrf.mxu0
        %v662 = vadd.f32 %v525, %v661
        %663 = vmatmul.bf16.gmra.mxu0 %v612
        %v664 = vpop.f32.mrf.mxu0
        %v665 = vadd.f32 %v525, %v664
        %v666 = vpop.f32.mrf.mxu0
        %v667 = vadd.f32 %v525, %v666
        %668 = vmatmul.bf16.gmra.mxu0 %v615
        %v669 = vpop.f32.mrf.mxu0
        %v670 = vadd.f32 %v525, %v669
        %v671 = vpop.f32.mrf.mxu0
        %v672 = vadd.f32 %v525, %v671
        %673 = vmatmul.bf16.gmra.mxu0 %v618
        %v674 = vpop.f32.mrf.mxu0
        %v675 = vadd.f32 %v525, %v674
        %v676 = vpop.f32.mrf.mxu0
        %v677 = vadd.f32 %v525, %v676
        %678 = vdwg.mxu0
        %v679 = vmax.f32 %v630, 0.0
        %v680 = vmax.f32 %v632, 0.0
        %v681 = vmax.f32 %v635, 0.0
        %v682 = vmax.f32 %v637, 0.0
        %v683 = vmax.f32 %v640, 0.0
        %v684 = vmax.f32 %v642, 0.0
        %v685 = vmax.f32 %v645, 0.0
        %v686 = vmax.f32 %v647, 0.0
        %v687 = vmax.f32 %v650, 0.0
        %v688 = vmax.f32 %v652, 0.0
        %v689 = vmax.f32 %v655, 0.0
        %v690 = vmax.f32 %v657, 0.0
        %v691 = vmax.f32 %v660, 0.0
        %v692 = vmax.f32 %v662, 0.0
        %v693 = vmax.f32 %v665, 0.0
        %v694 = vmax.f32 %v667, 0.0
        %v695 = vmax.f32 %v670, 0.0
        %v696 = vmax.f32 %v672, 0.0
        %v697 = vmax.f32 %v675, 0.0
        %v698 = vmax.f32 %v677, 0.0
        %v699 = vmul.f32 %v679, %v479
        %v700 = vmul.f32 %v680, %v480
        %v701 = vmul.f32 %v681, %v481
        %v702 = vmul.f32 %v682, %v482
        %v703 = vmul.f32 %v683, %v483
        %v704 = vmul.f32 %v684, %v484
        %v705 = vmul.f32 %v685, %v485
        %v706 = vmul.f32 %v686, %v486
        %v707 = vmul.f32 %v687, %v487
        %v708 = vmul.f32 %v688, %v488
        %v709 = vmul.f32 %v689, %v489
        %v710 = vmul.f32 %v690, %v490
        %v711 = vmul.f32 %v691, %v491
        %v712 = vmul.f32 %v692, %v492
        %v713 = vmul.f32 %v693, %v493
        %v714 = vmul.f32 %v694, %v494
        %v715 = vmul.f32 %v695, %v495
        %v716 = vmul.f32 %v696, %v496
        %v717 = vmul.f32 %v697, %v497
        %v718 = vmul.f32 %v698, %v498
        %v719 = vpack.c.bf16 %v699, %v699
        %v720 = vpack.c.bf16 %v700, %v700
        %v721 = vpack.c.bf16 %v701, %v701
        %v722 = vpack.c.bf16 %v702, %v702
        %v723 = vpack.c.bf16 %v703, %v703
        %v724 = vpack.c.bf16 %v704, %v704
        %v725 = vpack.c.bf16 %v705, %v705
        %v726 = vpack.c.bf16 %v706, %v706
        %v727 = vpack.c.bf16 %v707, %v707
        %v728 = vpack.c.bf16 %v708, %v708
        %v729 = vpack.c.bf16 %v709, %v709
        %v730 = vpack.c.bf16 %v710, %v710
        %v731 = vpack.c.bf16 %v711, %v711
        %v732 = vpack.c.bf16 %v712, %v712
        %v733 = vpack.c.bf16 %v713, %v713
        %v734 = vpack.c.bf16 %v714, %v714
        %v735 = vpack.c.bf16 %v715, %v715
        %v736 = vpack.c.bf16 %v716, %v716
        %v737 = vpack.c.bf16 %v717, %v717
        %v738 = vpack.c.bf16 %v718, %v718
        %v759 = vunpack.c.l.b16 %v719
        %v760 = vunpack.c.l.b16 %v720
        %v761 = vunpack.c.l.b16 %v721
        %v762 = vunpack.c.l.b16 %v722
        %v763 = vunpack.c.l.b16 %v723
        %v764 = vunpack.c.l.b16 %v724
        %v765 = vunpack.c.l.b16 %v725
        %v766 = vunpack.c.l.b16 %v726
        %v767 = vunpack.c.l.b16 %v727
        %v768 = vunpack.c.l.b16 %v728
        %v769 = vunpack.c.l.b16 %v729
        %v770 = vunpack.c.l.b16 %v730
        %v771 = vunpack.c.l.b16 %v731
        %v772 = vunpack.c.l.b16 %v732
        %v773 = vunpack.c.l.b16 %v733
        %v774 = vunpack.c.l.b16 %v734
        %v775 = vunpack.c.l.b16 %v735
        %v776 = vunpack.c.l.b16 %v736
        %v777 = vunpack.c.l.b16 %v737
        %v778 = vunpack.c.l.b16 %v738
        %v779 = vpack.c.b16 %v760, %v759
        %v780 = vpack.c.b16 %v762, %v761
        %v781 = vpack.c.b16 %v764, %v763
        %v782 = vpack.c.b16 %v766, %v765
        %v783 = vpack.c.b16 %v768, %v767
        %v784 = vpack.c.b16 %v770, %v769
        %v785 = vpack.c.b16 %v772, %v771
        %v786 = vpack.c.b16 %v774, %v773
        %v787 = vpack.c.b16 %v776, %v775
        %v788 = vpack.c.b16 %v778, %v777
        %vm789 = vsmask.f32 256
        %v791 = vshrl.u32 %v779, 16
        %v793 = vrot.slane %v791, 7
        %v794 = vshll.u32 %v779, 16
        %v796 = vor.u32 %v793, %v794
        %v798 = vshrl.u32 %v780, 16
        %v800 = vrot.slane %v798, 7
        %v801 = vshll.u32 %v780, 16
        %v803 = vor.u32 %v800, %v801
        %v804 = vsel %vm789, %v793, %v803
        %v806 = vshrl.u32 %v781, 16
        %v808 = vrot.slane %v806, 7
        %v809 = vshll.u32 %v781, 16
        %v811 = vor.u32 %v808, %v809
        %v812 = vsel %vm789, %v800, %v811
        %v814 = vshrl.u32 %v782, 16
        %v816 = vrot.slane %v814, 7
        %v817 = vshll.u32 %v782, 16
        %v819 = vor.u32 %v816, %v817
        %v820 = vsel %vm789, %v808, %v819
        %v822 = vshrl.u32 %v783, 16
        %v824 = vrot.slane %v822, 7
        %v825 = vshll.u32 %v783, 16
        %v827 = vor.u32 %v824, %v825
        %v828 = vsel %vm789, %v816, %v827
        %v830 = vshrl.u32 %v784, 16
        %v832 = vrot.slane %v830, 7
        %v833 = vshll.u32 %v784, 16
        %v835 = vor.u32 %v832, %v833
        %v836 = vsel %vm789, %v824, %v835
        %v838 = vshrl.u32 %v785, 16
        %v840 = vrot.slane %v838, 7
        %v841 = vshll.u32 %v785, 16
        %v843 = vor.u32 %v840, %v841
        %v844 = vsel %vm789, %v832, %v843
        %v846 = vshrl.u32 %v786, 16
        %v848 = vrot.slane %v846, 7
        %v849 = vshll.u32 %v786, 16
        %v851 = vor.u32 %v848, %v849
        %v852 = vsel %vm789, %v840, %v851
        %v854 = vshrl.u32 %v787, 16
        %v856 = vrot.slane %v854, 7
        %v857 = vshll.u32 %v787, 16
        %v859 = vor.u32 %v856, %v857
        %v860 = vsel %vm789, %v848, %v859
        %v862 = vshrl.u32 %v788, 16
        %v864 = vrot.slane %v862, 7
        %v865 = vshll.u32 %v788, 16
        %v867 = vor.u32 %v864, %v865
        %v868 = vsel %vm789, %v856, %v867
        %vm871 = vcmask 1040384
        %vm872 = vmand %vm871, %vm789
        %v873 = vsel %vm872, 0, %v796
        %v874 = vsel %vm872, %v864, 0
        %vm875 = vsmask.f32 7424
        %v877 = vshrl.u32 0, 16
        %v879 = vshll.u32 0, 16
        %v881 = vrot.slane %v879, 1
        %v882 = vor.u32 %v877, %v881
        %v884 = vshll.u32 %v873, 16
        %v886 = vrot.slane %v884, 1
        %v887 = vsel %vm875, %v882, %v886
        %v888 = vshrl.u32 %v873, 16
        %v890 = vor.u32 %v888, %v886
        %v892 = vshll.u32 %v804, 16
        %v894 = vrot.slane %v892, 1
        %v895 = vsel %vm875, %v890, %v894
        %v896 = vshrl.u32 %v804, 16
        %v898 = vor.u32 %v896, %v894
        %v900 = vshll.u32 %v812, 16
        %v902 = vrot.slane %v900, 1
        %v903 = vsel %vm875, %v898, %v902
        %v904 = vshrl.u32 %v812, 16
        %v906 = vor.u32 %v904, %v902
        %v908 = vshll.u32 %v820, 16
        %v910 = vrot.slane %v908, 1
        %v911 = vsel %vm875, %v906, %v910
        %v912 = vshrl.u32 %v820, 16
        %v914 = vor.u32 %v912, %v910
        %v916 = vshll.u32 %v828, 16
        %v918 = vrot.slane %v916, 1
        %v919 = vsel %vm875, %v914, %v918
        %v920 = vshrl.u32 %v828, 16
        %v922 = vor.u32 %v920, %v918
        %v924 = vshll.u32 %v836, 16
        %v926 = vrot.slane %v924, 1
        %v927 = vsel %vm875, %v922, %v926
        %v928 = vshrl.u32 %v836, 16
        %v930 = vor.u32 %v928, %v926
        %v932 = vshll.u32 %v844, 16
        %v934 = vrot.slane %v932, 1
        %v935 = vsel %vm875, %v930, %v934
        %v936 = vshrl.u32 %v844, 16
        %v938 = vor.u32 %v936, %v934
        %v940 = vshll.u32 %v852, 16
        %v942 = vrot.slane %v940, 1
        %v943 = vsel %vm875, %v938, %v942
        %v944 = vshrl.u32 %v852, 16
        %v946 = vor.u32 %v944, %v942
        %v948 = vshll.u32 %v860, 16
        %v950 = vrot.slane %v948, 1
        %v951 = vsel %vm875, %v946, %v950
        %v952 = vshrl.u32 %v860, 16
        %v954 = vor.u32 %v952, %v950
        %v956 = vshll.u32 %v868, 16
        %v958 = vrot.slane %v956, 1
        %v959 = vsel %vm875, %v954, %v958
        %v960 = vshrl.u32 %v868, 16
        %v962 = vor.u32 %v960, %v958
        %v964 = vshll.u32 %v874, 16
        %v966 = vrot.slane %v964, 1
        %v967 = vsel %vm875, %v962, %v966
        %v968 = vshrl.u32 %v874, 16
        %v970 = vor.u32 %v968, %v966
        %v971 = vsel %vm875, %v970, %v881
        %972 = vrot.lane.b32.xlu0 %v887, 32
        %v973 = vpop.permute.xlu0 %972
        %974 = vrot.lane.b32.xlu0 %v895, 32
        %v975 = vpop.permute.xlu0 %974
        %976 = vrot.lane.b32.xlu0 %v903, 32
        %v977 = vpop.permute.xlu0 %976
        %978 = vrot.lane.b32.xlu0 %v911, 32
        %v979 = vpop.permute.xlu0 %978
        %980 = vrot.lane.b32.xlu0 %v919, 32
        %v981 = vpop.permute.xlu0 %980
        %982 = vrot.lane.b32.xlu0 %v927, 32
        %v983 = vpop.permute.xlu0 %982
        %984 = vrot.lane.b32.xlu0 %v935, 32
        %v985 = vpop.permute.xlu0 %984
        %986 = vrot.lane.b32.xlu0 %v943, 32
        %v987 = vpop.permute.xlu0 %986
        %988 = vrot.lane.b32.xlu0 %v951, 32
        %v989 = vpop.permute.xlu0 %988
        %990 = vrot.lane.b32.xlu0 %v959, 32
        %v991 = vpop.permute.xlu0 %990
        %992 = vrot.lane.b32.xlu0 %v967, 32
        %v993 = vpop.permute.xlu0 %992
        %994 = vrot.lane.b32.xlu0 %v971, 32
        %v995 = vpop.permute.xlu0 %994
        %vm999 = vcmask 1046528
        %v1000 = vrot.slane 0, 1
        %v1001 = vrot.slane %v873, 1
        %v1002 = vsel %vm999, %v1000, %v1001
        %v1003 = vrot.slane %v804, 1
        %v1004 = vsel %vm999, %v1001, %v1003
        %v1005 = vrot.slane %v812, 1
        %v1006 = vsel %vm999, %v1003, %v1005
        %v1007 = vrot.slane %v820, 1
        %v1008 = vsel %vm999, %v1005, %v1007
        %v1009 = vrot.slane %v828, 1
        %v1010 = vsel %vm999, %v1007, %v1009
        %v1011 = vrot.slane %v836, 1
        %v1012 = vsel %vm999, %v1009, %v1011
        %v1013 = vrot.slane %v844, 1
        %v1014 = vsel %vm999, %v1011, %v1013
        %v1015 = vrot.slane %v852, 1
        %v1016 = vsel %vm999, %v1013, %v1015
        %v1017 = vrot.slane %v860, 1
        %v1018 = vsel %vm999, %v1015, %v1017
        %v1019 = vrot.slane %v868, 1
        %v1020 = vsel %vm999, %v1017, %v1019
        %v1021 = vrot.slane %v874, 1
        %v1022 = vsel %vm999, %v1019, %v1021
        %v1023 = vsel %vm999, %v1021, %v1000
        %1024 = vrot.lane.b32.xlu0 %v1002, 64
        %v1025 = vpop.permute.xlu0 %1024
        %1026 = vrot.lane.b32.xlu0 %v1004, 64
        %v1027 = vpop.permute.xlu0 %1026
        %1028 = vrot.lane.b32.xlu0 %v1006, 64
        %v1029 = vpop.permute.xlu0 %1028
        %1030 = vrot.lane.b32.xlu0 %v1008, 64
        %v1031 = vpop.permute.xlu0 %1030
        %1032 = vrot.lane.b32.xlu0 %v1010, 64
        %v1033 = vpop.permute.xlu0 %1032
        %1034 = vrot.lane.b32.xlu0 %v1012, 64
        %v1035 = vpop.permute.xlu0 %1034
        %1036 = vrot.lane.b32.xlu0 %v1014, 64
        %v1037 = vpop.permute.xlu0 %1036
        %1038 = vrot.lane.b32.xlu0 %v1016, 64
        %v1039 = vpop.permute.xlu0 %1038
        %1040 = vrot.lane.b32.xlu0 %v1018, 64
        %v1041 = vpop.permute.xlu0 %1040
        %1042 = vrot.lane.b32.xlu0 %v1020, 64
        %v1043 = vpop.permute.xlu0 %1042
        %1044 = vrot.lane.b32.xlu0 %v1022, 64
        %v1045 = vpop.permute.xlu0 %1044
        %1046 = vrot.lane.b32.xlu0 %v1023, 64
        %v1047 = vpop.permute.xlu0 %1046
        %v1049 = vsel %vm589, 0, %v973
        %v1051 = vsel %vm589, %v873, %v975
        %v1053 = vsel %vm589, %v804, %v977
        %v1055 = vsel %vm589, %v812, %v979
        %v1057 = vsel %vm589, %v820, %v981
        %v1059 = vsel %vm589, %v828, %v983
        %v1061 = vsel %vm589, %v836, %v985
        %v1063 = vsel %vm589, %v844, %v987
        %v1065 = vsel %vm589, %v852, %v989
        %v1067 = vsel %vm589, %v860, %v991
        %v1069 = vsel %vm589, %v868, %v993
        %v1071 = vsel %vm589, %v874, %v995
        %vm1072 = vcmask 523264
        %v1074 = vsel %vm1072, %v1049, %v1025
        %v1076 = vsel %vm1072, %v1051, %v1027
        %v1078 = vsel %vm1072, %v1053, %v1029
        %v1080 = vsel %vm1072, %v1055, %v1031
        %v1082 = vsel %vm1072, %v1057, %v1033
        %v1084 = vsel %vm1072, %v1059, %v1035
        %v1086 = vsel %vm1072, %v1061, %v1037
        %v1088 = vsel %vm1072, %v1063, %v1039
        %v1090 = vsel %vm1072, %v1065, %v1041
        %v1092 = vsel %vm1072, %v1067, %v1043
        %v1094 = vsel %vm1072, %v1069, %v1045
        %v1096 = vsel %vm1072, %v1071, %v1047
        %v1097 = vld [vmem:[%s3] sm:$0xf]
        %v1098 = vld [vmem:[%s3 + $0x4] sm:$0xf]
        %v1099 = vld [vmem:[%s3 + $0x8] sm:$0xf]
        %v1100 = vld [vmem:[%s3 + $0xc] sm:$0xf]
        %v1101 = vld [vmem:[%s3 + $0x10] sm:$0xf]
        %v1102 = vld [vmem:[%s3 + $0x14] sm:$0xf]
        %v1103 = vld [vmem:[%s3 + $0x18] sm:$0xf]
        %v1104 = vld [vmem:[%s3 + $0x1c] sm:$0xf]
        %v1105 = vld [vmem:[%s3 + $0x20] sm:$0xf]
        %v1106 = vld [vmem:[%s3 + $0x24] sm:$0xf]
        %v1107 = vld [vmem:[%s3 + $0x28] sm:$0xf]
        %v1108 = vld [vmem:[%s3 + $0x2c] sm:$0xf]
        %s1109 = scalar_lea.vmem %s3, 48
        %v1110 = vld [vmem:[%s1109] sm:$0xf]
        %v1111 = vld [vmem:[%s1109 + $0x4] sm:$0xf]
        %v1112 = vld [vmem:[%s1109 + $0x8] sm:$0xf]
        %v1113 = vld [vmem:[%s1109 + $0xc] sm:$0xf]
        %v1114 = vld [vmem:[%s1109 + $0x10] sm:$0xf]
        %v1115 = vld [vmem:[%s1109 + $0x14] sm:$0xf]
        %v1116 = vld [vmem:[%s1109 + $0x18] sm:$0xf]
        %v1117 = vld [vmem:[%s1109 + $0x1c] sm:$0xf]
        %v1118 = vld [vmem:[%s1109 + $0x20] sm:$0xf]
        %v1119 = vld [vmem:[%s1109 + $0x24] sm:$0xf]
        %v1120 = vld [vmem:[%s1109 + $0x28] sm:$0xf]
        %v1121 = vld [vmem:[%s1109 + $0x2c] sm:$0xf]
        %v1134 = vunpack.c.l.b16 %v1110
        %v1135 = vunpack.c.l.b16 %v1111
        %v1136 = vunpack.c.l.b16 %v1112
        %v1137 = vunpack.c.l.b16 %v1113
        %v1138 = vunpack.c.l.b16 %v1114
        %v1139 = vunpack.c.l.b16 %v1115
        %v1140 = vunpack.c.l.b16 %v1116
        %v1141 = vunpack.c.l.b16 %v1117
        %v1142 = vunpack.c.l.b16 %v1118
        %v1143 = vunpack.c.l.b16 %v1119
        %v1144 = vunpack.c.l.b16 %v1120
        %v1145 = vunpack.c.l.b16 %v1121
        %v1146 = vpack.c.b16 %v1135, %v1134
        %v1147 = vpack.c.b16 %v1137, %v1136
        %v1148 = vpack.c.b16 %v1139, %v1138
        %v1149 = vpack.c.b16 %v1141, %v1140
        %v1150 = vpack.c.b16 %v1143, %v1142
        %v1151 = vpack.c.b16 %v1145, %v1144
        %vm1158 = vcmask 785408
        %v1159 = vsel %vm1158, %v1076, 0
        %v1161 = vsel %vm1158, %v1078, 0
        %v1163 = vsel %vm1158, %v1080, 0
        %v1165 = vsel %vm1158, %v1082, 0
        %v1167 = vsel %vm1158, %v1084, 0
        %v1169 = vsel %vm1158, %v1086, 0
        %v1171 = vsel %vm1158, %v1088, 0
        %v1173 = vsel %vm1158, %v1090, 0
        %v1175 = vsel %vm1158, %v1092, 0
        %v1177 = vsel %vm1158, %v1094, 0
        %1179 = vmatpush.bf16.msra.mxu0 0
        %1180 = vmatpush.bf16.msra.mxu0 0
        %1181 = vmatpush.bf16.msra.mxu0 %v1151
        %1182 = vmatpush.bf16.msra.mxu0 %v1150
        %1183 = vmatpush.bf16.msra.mxu0 %v1149
        %1184 = vmatpush.bf16.msra.mxu0 %v1148
        %1185 = vmatpush.bf16.msra.mxu0 %v1147
        %1186 = vmatpush.bf16.msra.mxu0 %v1146
        %1187 = vmatmul.bf16.gmra.mxu0 %v1159
        %v1188 = vpop.f32.mrf.mxu0
        %v1189 = vadd.f32 0.0, %v1188
        %v1190 = vpop.f32.mrf.mxu0
        %v1191 = vadd.f32 0.0, %v1190
        %1192 = vmatmul.bf16.gmra.mxu0 %v1161
        %v1193 = vpop.f32.mrf.mxu0
        %v1194 = vadd.f32 0.0, %v1193
        %v1195 = vpop.f32.mrf.mxu0
        %v1196 = vadd.f32 0.0, %v1195
        %1197 = vmatmul.bf16.gmra.mxu0 %v1163
        %v1198 = vpop.f32.mrf.mxu0
        %v1199 = vadd.f32 0.0, %v1198
        %v1200 = vpop.f32.mrf.mxu0
        %v1201 = vadd.f32 0.0, %v1200
        %1202 = vmatmul.bf16.gmra.mxu0 %v1165
        %v1203 = vpop.f32.mrf.mxu0
        %v1204 = vadd.f32 0.0, %v1203
        %v1205 = vpop.f32.mrf.mxu0
        %v1206 = vadd.f32 0.0, %v1205
        %1207 = vmatmul.bf16.gmra.mxu0 %v1167
        %v1208 = vpop.f32.mrf.mxu0
        %v1209 = vadd.f32 0.0, %v1208
        %v1210 = vpop.f32.mrf.mxu0
        %v1211 = vadd.f32 0.0, %v1210
        %1212 = vmatmul.bf16.gmra.mxu0 %v1169
        %v1213 = vpop.f32.mrf.mxu0
        %v1214 = vadd.f32 0.0, %v1213
        %v1215 = vpop.f32.mrf.mxu0
        %v1216 = vadd.f32 0.0, %v1215
        %1217 = vmatmul.bf16.gmra.mxu0 %v1171
        %v1218 = vpop.f32.mrf.mxu0
        %v1219 = vadd.f32 0.0, %v1218
        %v1220 = vpop.f32.mrf.mxu0
        %v1221 = vadd.f32 0.0, %v1220
        %1222 = vmatmul.bf16.gmra.mxu0 %v1173
        %v1223 = vpop.f32.mrf.mxu0
        %v1224 = vadd.f32 0.0, %v1223
        %v1225 = vpop.f32.mrf.mxu0
        %v1226 = vadd.f32 0.0, %v1225
        %1227 = vmatmul.bf16.gmra.mxu0 %v1175
        %v1228 = vpop.f32.mrf.mxu0
        %v1229 = vadd.f32 0.0, %v1228
        %v1230 = vpop.f32.mrf.mxu0
        %v1231 = vadd.f32 0.0, %v1230
        %1232 = vmatmul.bf16.gmra.mxu0 %v1177
        %v1233 = vpop.f32.mrf.mxu0
        %v1234 = vadd.f32 0.0, %v1233
        %v1235 = vpop.f32.mrf.mxu0
        %v1236 = vadd.f32 0.0, %v1235
        %1237 = vdwg.mxu0
        %v1250 = vunpack.c.l.b16 %v1097
        %v1251 = vunpack.c.l.b16 %v1098
        %v1252 = vunpack.c.l.b16 %v1099
        %v1253 = vunpack.c.l.b16 %v1100
        %v1254 = vunpack.c.l.b16 %v1101
        %v1255 = vunpack.c.l.b16 %v1102
        %v1256 = vunpack.c.l.b16 %v1103
        %v1257 = vunpack.c.l.b16 %v1104
        %v1258 = vunpack.c.l.b16 %v1105
        %v1259 = vunpack.c.l.b16 %v1106
        %v1260 = vunpack.c.l.b16 %v1107
        %v1261 = vunpack.c.l.b16 %v1108
        %v1262 = vpack.c.b16 %v1251, %v1250
        %v1263 = vpack.c.b16 %v1253, %v1252
        %v1264 = vpack.c.b16 %v1255, %v1254
        %v1265 = vpack.c.b16 %v1257, %v1256
        %v1266 = vpack.c.b16 %v1259, %v1258
        %v1267 = vpack.c.b16 %v1261, %v1260
        %v1274 = vsel %vm1158, %v1074, 0
        %1276 = vmatpush.bf16.msra.mxu0 0
        %1277 = vmatpush.bf16.msra.mxu0 0
        %1278 = vmatpush.bf16.msra.mxu0 %v1267
        %1279 = vmatpush.bf16.msra.mxu0 %v1266
        %1280 = vmatpush.bf16.msra.mxu0 %v1265
        %1281 = vmatpush.bf16.msra.mxu0 %v1264
        %1282 = vmatpush.bf16.msra.mxu0 %v1263
        %1283 = vmatpush.bf16.msra.mxu0 %v1262
        %1284 = vmatmul.bf16.gmra.mxu0 %v1274
        %v1285 = vpop.f32.mrf.mxu0
        %v1286 = vadd.f32 %v1189, %v1285
        %v1287 = vpop.f32.mrf.mxu0
        %v1288 = vadd.f32 %v1191, %v1287
        %1289 = vmatmul.bf16.gmra.mxu0 %v1159
        %v1290 = vpop.f32.mrf.mxu0
        %v1291 = vadd.f32 %v1194, %v1290
        %v1292 = vpop.f32.mrf.mxu0
        %v1293 = vadd.f32 %v1196, %v1292
        %1294 = vmatmul.bf16.gmra.mxu0 %v1161
        %v1295 = vpop.f32.mrf.mxu0
        %v1296 = vadd.f32 %v1199, %v1295
        %v1297 = vpop.f32.mrf.mxu0
        %v1298 = vadd.f32 %v1201, %v1297
        %1299 = vmatmul.bf16.gmra.mxu0 %v1163
        %v1300 = vpop.f32.mrf.mxu0
        %v1301 = vadd.f32 %v1204, %v1300
        %v1302 = vpop.f32.mrf.mxu0
        %v1303 = vadd.f32 %v1206, %v1302
        %1304 = vmatmul.bf16.gmra.mxu0 %v1165
        %v1305 = vpop.f32.mrf.mxu0
        %v1306 = vadd.f32 %v1209, %v1305
        %v1307 = vpop.f32.mrf.mxu0
        %v1308 = vadd.f32 %v1211, %v1307
        %1309 = vmatmul.bf16.gmra.mxu0 %v1167
        %v1310 = vpop.f32.mrf.mxu0
        %v1311 = vadd.f32 %v1214, %v1310
        %v1312 = vpop.f32.mrf.mxu0
        %v1313 = vadd.f32 %v1216, %v1312
        %1314 = vmatmul.bf16.gmra.mxu0 %v1169
        %v1315 = vpop.f32.mrf.mxu0
        %v1316 = vadd.f32 %v1219, %v1315
        %v1317 = vpop.f32.mrf.mxu0
        %v1318 = vadd.f32 %v1221, %v1317
        %1319 = vmatmul.bf16.gmra.mxu0 %v1171
        %v1320 = vpop.f32.mrf.mxu0
        %v1321 = vadd.f32 %v1224, %v1320
        %v1322 = vpop.f32.mrf.mxu0
        %v1323 = vadd.f32 %v1226, %v1322
        %1324 = vmatmul.bf16.gmra.mxu0 %v1173
        %v1325 = vpop.f32.mrf.mxu0
        %v1326 = vadd.f32 %v1229, %v1325
        %v1327 = vpop.f32.mrf.mxu0
        %v1328 = vadd.f32 %v1231, %v1327
        %1329 = vmatmul.bf16.gmra.mxu0 %v1175
        %v1330 = vpop.f32.mrf.mxu0
        %v1331 = vadd.f32 %v1234, %v1330
        %v1332 = vpop.f32.mrf.mxu0
        %v1333 = vadd.f32 %v1236, %v1332
        %1334 = vdwg.mxu0
        %s1335 = scalar_lea.vmem %s3, 96
        %v1336 = vld [vmem:[%s1335] sm:$0xf]
        %v1337 = vld [vmem:[%s1335 + $0x4] sm:$0xf]
        %v1338 = vld [vmem:[%s1335 + $0x8] sm:$0xf]
        %v1339 = vld [vmem:[%s1335 + $0xc] sm:$0xf]
        %v1340 = vld [vmem:[%s1335 + $0x10] sm:$0xf]
        %v1341 = vld [vmem:[%s1335 + $0x14] sm:$0xf]
        %v1342 = vld [vmem:[%s1335 + $0x18] sm:$0xf]
        %v1343 = vld [vmem:[%s1335 + $0x1c] sm:$0xf]
        %v1344 = vld [vmem:[%s1335 + $0x20] sm:$0xf]
        %v1345 = vld [vmem:[%s1335 + $0x24] sm:$0xf]
        %v1346 = vld [vmem:[%s1335 + $0x28] sm:$0xf]
        %v1347 = vld [vmem:[%s1335 + $0x2c] sm:$0xf]
        %v1360 = vunpack.c.l.b16 %v1336
        %v1361 = vunpack.c.l.b16 %v1337
        %v1362 = vunpack.c.l.b16 %v1338
        %v1363 = vunpack.c.l.b16 %v1339
        %v1364 = vunpack.c.l.b16 %v1340
        %v1365 = vunpack.c.l.b16 %v1341
        %v1366 = vunpack.c.l.b16 %v1342
        %v1367 = vunpack.c.l.b16 %v1343
        %v1368 = vunpack.c.l.b16 %v1344
        %v1369 = vunpack.c.l.b16 %v1345
        %v1370 = vunpack.c.l.b16 %v1346
        %v1371 = vunpack.c.l.b16 %v1347
        %v1372 = vpack.c.b16 %v1361, %v1360
        %v1373 = vpack.c.b16 %v1363, %v1362
        %v1374 = vpack.c.b16 %v1365, %v1364
        %v1375 = vpack.c.b16 %v1367, %v1366
        %v1376 = vpack.c.b16 %v1369, %v1368
        %v1377 = vpack.c.b16 %v1371, %v1370
        %v1384 = vsel %vm1158, %v1096, 0
        %1386 = vmatpush.bf16.msra.mxu0 0
        %1387 = vmatpush.bf16.msra.mxu0 0
        %1388 = vmatpush.bf16.msra.mxu0 %v1377
        %1389 = vmatpush.bf16.msra.mxu0 %v1376
        %1390 = vmatpush.bf16.msra.mxu0 %v1375
        %1391 = vmatpush.bf16.msra.mxu0 %v1374
        %1392 = vmatpush.bf16.msra.mxu0 %v1373
        %1393 = vmatpush.bf16.msra.mxu0 %v1372
        %1394 = vmatmul.bf16.gmra.mxu0 %v1161
        %v1395 = vpop.f32.mrf.mxu0
        %v1396 = vadd.f32 0.0, %v1395
        %v1397 = vpop.f32.mrf.mxu0
        %v1398 = vadd.f32 0.0, %v1397
        %1399 = vmatmul.bf16.gmra.mxu0 %v1163
        %v1400 = vpop.f32.mrf.mxu0
        %v1401 = vadd.f32 0.0, %v1400
        %v1402 = vpop.f32.mrf.mxu0
        %v1403 = vadd.f32 0.0, %v1402
        %1404 = vmatmul.bf16.gmra.mxu0 %v1165
        %v1405 = vpop.f32.mrf.mxu0
        %v1406 = vadd.f32 0.0, %v1405
        %v1407 = vpop.f32.mrf.mxu0
        %v1408 = vadd.f32 0.0, %v1407
        %1409 = vmatmul.bf16.gmra.mxu0 %v1167
        %v1410 = vpop.f32.mrf.mxu0
        %v1411 = vadd.f32 0.0, %v1410
        %v1412 = vpop.f32.mrf.mxu0
        %v1413 = vadd.f32 0.0, %v1412
        %1414 = vmatmul.bf16.gmra.mxu0 %v1169
        %v1415 = vpop.f32.mrf.mxu0
        %v1416 = vadd.f32 0.0, %v1415
        %v1417 = vpop.f32.mrf.mxu0
        %v1418 = vadd.f32 0.0, %v1417
        %1419 = vmatmul.bf16.gmra.mxu0 %v1171
        %v1420 = vpop.f32.mrf.mxu0
        %v1421 = vadd.f32 0.0, %v1420
        %v1422 = vpop.f32.mrf.mxu0
        %v1423 = vadd.f32 0.0, %v1422
        %1424 = vmatmul.bf16.gmra.mxu0 %v1173
        %v1425 = vpop.f32.mrf.mxu0
        %v1426 = vadd.f32 0.0, %v1425
        %v1427 = vpop.f32.mrf.mxu0
        %v1428 = vadd.f32 0.0, %v1427
        %1429 = vmatmul.bf16.gmra.mxu0 %v1175
        %v1430 = vpop.f32.mrf.mxu0
        %v1431 = vadd.f32 0.0, %v1430
        %v1432 = vpop.f32.mrf.mxu0
        %v1433 = vadd.f32 0.0, %v1432
        %1434 = vmatmul.bf16.gmra.mxu0 %v1177
        %v1435 = vpop.f32.mrf.mxu0
        %v1436 = vadd.f32 0.0, %v1435
        %v1437 = vpop.f32.mrf.mxu0
        %v1438 = vadd.f32 0.0, %v1437
        %1439 = vmatmul.bf16.gmra.mxu0 %v1384
        %v1440 = vpop.f32.mrf.mxu0
        %v1441 = vadd.f32 0.0, %v1440
        %v1442 = vpop.f32.mrf.mxu0
        %v1443 = vadd.f32 0.0, %v1442
        %1444 = vdwg.mxu0
        %v1445 = vadd.f32 %v1286, %v1396
        %v1446 = vadd.f32 %v1288, %v1398
        %v1447 = vadd.f32 %v1291, %v1401
        %v1448 = vadd.f32 %v1293, %v1403
        %v1449 = vadd.f32 %v1296, %v1406
        %v1450 = vadd.f32 %v1298, %v1408
        %v1451 = vadd.f32 %v1301, %v1411
        %v1452 = vadd.f32 %v1303, %v1413
        %v1453 = vadd.f32 %v1306, %v1416
        %v1454 = vadd.f32 %v1308, %v1418
        %v1455 = vadd.f32 %v1311, %v1421
        %v1456 = vadd.f32 %v1313, %v1423
        %v1457 = vadd.f32 %v1316, %v1426
        %v1458 = vadd.f32 %v1318, %v1428
        %v1459 = vadd.f32 %v1321, %v1431
        %v1460 = vadd.f32 %v1323, %v1433
        %v1461 = vadd.f32 %v1326, %v1436
        %v1462 = vadd.f32 %v1328, %v1438
        %v1463 = vadd.f32 %v1331, %v1441
        %v1464 = vadd.f32 %v1333, %v1443
        %v1465 = vld [vmem:[%s4] sm:$0x1]
        %v1467 = vperm.slane %v1465, 0
        %v1469 = vadd.f32 %v1445, %v1467
        %v1470 = vadd.f32 %v1446, %v1467
        %v1471 = vadd.f32 %v1447, %v1467
        %v1472 = vadd.f32 %v1448, %v1467
        %v1473 = vadd.f32 %v1449, %v1467
        %v1474 = vadd.f32 %v1450, %v1467
        %v1475 = vadd.f32 %v1451, %v1467
        %v1476 = vadd.f32 %v1452, %v1467
        %v1477 = vadd.f32 %v1453, %v1467
        %v1478 = vadd.f32 %v1454, %v1467
        %v1479 = vadd.f32 %v1455, %v1467
        %v1480 = vadd.f32 %v1456, %v1467
        %v1481 = vadd.f32 %v1457, %v1467
        %v1482 = vadd.f32 %v1458, %v1467
        %v1483 = vadd.f32 %v1459, %v1467
        %v1484 = vadd.f32 %v1460, %v1467
        %v1485 = vadd.f32 %v1461, %v1467
        %v1486 = vadd.f32 %v1462, %v1467
        %v1487 = vadd.f32 %v1463, %v1467
        %v1488 = vadd.f32 %v1464, %v1467
        %v1489 = vmax.f32 %v1469, 0.0
        %v1490 = vmax.f32 %v1470, 0.0
        %v1491 = vmax.f32 %v1471, 0.0
        %v1492 = vmax.f32 %v1472, 0.0
        %v1493 = vmax.f32 %v1473, 0.0
        %v1494 = vmax.f32 %v1474, 0.0
        %v1495 = vmax.f32 %v1475, 0.0
        %v1496 = vmax.f32 %v1476, 0.0
        %v1497 = vmax.f32 %v1477, 0.0
        %v1498 = vmax.f32 %v1478, 0.0
        %v1499 = vmax.f32 %v1479, 0.0
        %v1500 = vmax.f32 %v1480, 0.0
        %v1501 = vmax.f32 %v1481, 0.0
        %v1502 = vmax.f32 %v1482, 0.0
        %v1503 = vmax.f32 %v1483, 0.0
        %v1504 = vmax.f32 %v1484, 0.0
        %v1505 = vmax.f32 %v1485, 0.0
        %v1506 = vmax.f32 %v1486, 0.0
        %v1507 = vmax.f32 %v1487, 0.0
        %v1508 = vmax.f32 %v1488, 0.0
        %v1509 = vmul.f32 %v1489, %v479
        %v1510 = vmul.f32 %v1490, %v480
        %v1511 = vmul.f32 %v1491, %v481
        %v1512 = vmul.f32 %v1492, %v482
        %v1513 = vmul.f32 %v1493, %v483
        %v1514 = vmul.f32 %v1494, %v484
        %v1515 = vmul.f32 %v1495, %v485
        %v1516 = vmul.f32 %v1496, %v486
        %v1517 = vmul.f32 %v1497, %v487
        %v1518 = vmul.f32 %v1498, %v488
        %v1519 = vmul.f32 %v1499, %v489
        %v1520 = vmul.f32 %v1500, %v490
        %v1521 = vmul.f32 %v1501, %v491
        %v1522 = vmul.f32 %v1502, %v492
        %v1523 = vmul.f32 %v1503, %v493
        %v1524 = vmul.f32 %v1504, %v494
        %v1525 = vmul.f32 %v1505, %v495
        %v1526 = vmul.f32 %v1506, %v496
        %v1527 = vmul.f32 %v1507, %v497
        %v1528 = vmul.f32 %v1508, %v498
        %v1529 = vpack.c.bf16 %v1509, %v1509
        %v1530 = vpack.c.bf16 %v1510, %v1510
        %v1531 = vpack.c.bf16 %v1511, %v1511
        %v1532 = vpack.c.bf16 %v1512, %v1512
        %v1533 = vpack.c.bf16 %v1513, %v1513
        %v1534 = vpack.c.bf16 %v1514, %v1514
        %v1535 = vpack.c.bf16 %v1515, %v1515
        %v1536 = vpack.c.bf16 %v1516, %v1516
        %v1537 = vpack.c.bf16 %v1517, %v1517
        %v1538 = vpack.c.bf16 %v1518, %v1518
        %v1539 = vpack.c.bf16 %v1519, %v1519
        %v1540 = vpack.c.bf16 %v1520, %v1520
        %v1541 = vpack.c.bf16 %v1521, %v1521
        %v1542 = vpack.c.bf16 %v1522, %v1522
        %v1543 = vpack.c.bf16 %v1523, %v1523
        %v1544 = vpack.c.bf16 %v1524, %v1524
        %v1545 = vpack.c.bf16 %v1525, %v1525
        %v1546 = vpack.c.bf16 %v1526, %v1526
        %v1547 = vpack.c.bf16 %v1527, %v1527
        %v1548 = vpack.c.bf16 %v1528, %v1528
        %v1569 = vunpack.c.l.b16 %v1529
        %v1570 = vunpack.c.l.b16 %v1530
        %v1571 = vunpack.c.l.b16 %v1531
        %v1572 = vunpack.c.l.b16 %v1532
        %v1573 = vunpack.c.l.b16 %v1533
        %v1574 = vunpack.c.l.b16 %v1534
        %v1575 = vunpack.c.l.b16 %v1535
        %v1576 = vunpack.c.l.b16 %v1536
        %v1577 = vunpack.c.l.b16 %v1537
        %v1578 = vunpack.c.l.b16 %v1538
        %v1579 = vunpack.c.l.b16 %v1539
        %v1580 = vunpack.c.l.b16 %v1540
        %v1581 = vunpack.c.l.b16 %v1541
        %v1582 = vunpack.c.l.b16 %v1542
        %v1583 = vunpack.c.l.b16 %v1543
        %v1584 = vunpack.c.l.b16 %v1544
        %v1585 = vunpack.c.l.b16 %v1545
        %v1586 = vunpack.c.l.b16 %v1546
        %v1587 = vunpack.c.l.b16 %v1547
        %v1588 = vunpack.c.l.b16 %v1548
        %v1589 = vpack.c.b16 %v1570, %v1569
        %v1590 = vpack.c.b16 %v1572, %v1571
        %v1591 = vpack.c.b16 %v1574, %v1573
        %v1592 = vpack.c.b16 %v1576, %v1575
        %v1593 = vpack.c.b16 %v1578, %v1577
        %v1594 = vpack.c.b16 %v1580, %v1579
        %v1595 = vpack.c.b16 %v1582, %v1581
        %v1596 = vpack.c.b16 %v1584, %v1583
        %v1597 = vpack.c.b16 %v1586, %v1585
        %v1598 = vpack.c.b16 %v1588, %v1587
        %v1600 = vshrl.u32 %v1589, 16
        %v1602 = vrot.slane %v1600, 7
        %v1603 = vshll.u32 %v1589, 16
        %v1605 = vor.u32 %v1602, %v1603
        %v1607 = vshrl.u32 %v1590, 16
        %v1609 = vrot.slane %v1607, 7
        %v1610 = vshll.u32 %v1590, 16
        %v1612 = vor.u32 %v1609, %v1610
        %v1613 = vsel %vm789, %v1602, %v1612
        %v1615 = vshrl.u32 %v1591, 16
        %v1617 = vrot.slane %v1615, 7
        %v1618 = vshll.u32 %v1591, 16
        %v1620 = vor.u32 %v1617, %v1618
        %v1621 = vsel %vm789, %v1609, %v1620
        %v1623 = vshrl.u32 %v1592, 16
        %v1625 = vrot.slane %v1623, 7
        %v1626 = vshll.u32 %v1592, 16
        %v1628 = vor.u32 %v1625, %v1626
        %v1629 = vsel %vm789, %v1617, %v1628
        %v1631 = vshrl.u32 %v1593, 16
        %v1633 = vrot.slane %v1631, 7
        %v1634 = vshll.u32 %v1593, 16
        %v1636 = vor.u32 %v1633, %v1634
        %v1637 = vsel %vm789, %v1625, %v1636
        %v1639 = vshrl.u32 %v1594, 16
        %v1641 = vrot.slane %v1639, 7
        %v1642 = vshll.u32 %v1594, 16
        %v1644 = vor.u32 %v1641, %v1642
        %v1645 = vsel %vm789, %v1633, %v1644
        %v1647 = vshrl.u32 %v1595, 16
        %v1649 = vrot.slane %v1647, 7
        %v1650 = vshll.u32 %v1595, 16
        %v1652 = vor.u32 %v1649, %v1650
        %v1653 = vsel %vm789, %v1641, %v1652
        %v1655 = vshrl.u32 %v1596, 16
        %v1657 = vrot.slane %v1655, 7
        %v1658 = vshll.u32 %v1596, 16
        %v1660 = vor.u32 %v1657, %v1658
        %v1661 = vsel %vm789, %v1649, %v1660
        %v1663 = vshrl.u32 %v1597, 16
        %v1665 = vrot.slane %v1663, 7
        %v1666 = vshll.u32 %v1597, 16
        %v1668 = vor.u32 %v1665, %v1666
        %v1669 = vsel %vm789, %v1657, %v1668
        %v1671 = vshrl.u32 %v1598, 16
        %v1673 = vrot.slane %v1671, 7
        %v1674 = vshll.u32 %v1598, 16
        %v1676 = vor.u32 %v1673, %v1674
        %v1677 = vsel %vm789, %v1665, %v1676
        %v1680 = vsel %vm872, 0, %v1605
        %v1681 = vsel %vm872, %v1673, 0
        %v1683 = vshll.u32 %v1680, 16
        %v1685 = vrot.slane %v1683, 1
        %v1686 = vsel %vm875, %v882, %v1685
        %v1687 = vshrl.u32 %v1680, 16
        %v1689 = vor.u32 %v1687, %v1685
        %v1691 = vshll.u32 %v1613, 16
        %v1693 = vrot.slane %v1691, 1
        %v1694 = vsel %vm875, %v1689, %v1693
        %v1695 = vshrl.u32 %v1613, 16
        %v1697 = vor.u32 %v1695, %v1693
        %v1699 = vshll.u32 %v1621, 16
        %v1701 = vrot.slane %v1699, 1
        %v1702 = vsel %vm875, %v1697, %v1701
        %v1703 = vshrl.u32 %v1621, 16
        %v1705 = vor.u32 %v1703, %v1701
        %v1707 = vshll.u32 %v1629, 16
        %v1709 = vrot.slane %v1707, 1
        %v1710 = vsel %vm875, %v1705, %v1709
        %v1711 = vshrl.u32 %v1629, 16
        %v1713 = vor.u32 %v1711, %v1709
        %v1715 = vshll.u32 %v1637, 16
        %v1717 = vrot.slane %v1715, 1
        %v1718 = vsel %vm875, %v1713, %v1717
        %v1719 = vshrl.u32 %v1637, 16
        %v1721 = vor.u32 %v1719, %v1717
        %v1723 = vshll.u32 %v1645, 16
        %v1725 = vrot.slane %v1723, 1
        %v1726 = vsel %vm875, %v1721, %v1725
        %v1727 = vshrl.u32 %v1645, 16
        %v1729 = vor.u32 %v1727, %v1725
        %v1731 = vshll.u32 %v1653, 16
        %v1733 = vrot.slane %v1731, 1
        %v1734 = vsel %vm875, %v1729, %v1733
        %v1735 = vshrl.u32 %v1653, 16
        %v1737 = vor.u32 %v1735, %v1733
        %v1739 = vshll.u32 %v1661, 16
        %v1741 = vrot.slane %v1739, 1
        %v1742 = vsel %vm875, %v1737, %v1741
        %v1743 = vshrl.u32 %v1661, 16
        %v1745 = vor.u32 %v1743, %v1741
        %v1747 = vshll.u32 %v1669, 16
        %v1749 = vrot.slane %v1747, 1
        %v1750 = vsel %vm875, %v1745, %v1749
        %v1751 = vshrl.u32 %v1669, 16
        %v1753 = vor.u32 %v1751, %v1749
        %v1755 = vshll.u32 %v1677, 16
        %v1757 = vrot.slane %v1755, 1
        %v1758 = vsel %vm875, %v1753, %v1757
        %v1759 = vshrl.u32 %v1677, 16
        %v1761 = vor.u32 %v1759, %v1757
        %v1763 = vshll.u32 %v1681, 16
        %v1765 = vrot.slane %v1763, 1
        %v1766 = vsel %vm875, %v1761, %v1765
        %v1767 = vshrl.u32 %v1681, 16
        %v1769 = vor.u32 %v1767, %v1765
        %v1770 = vsel %vm875, %v1769, %v881
        %1771 = vrot.lane.b32.xlu0 %v1686, 32
        %v1772 = vpop.permute.xlu0 %1771
        %1773 = vrot.lane.b32.xlu0 %v1694, 32
        %v1774 = vpop.permute.xlu0 %1773
        %1775 = vrot.lane.b32.xlu0 %v1702, 32
        %v1776 = vpop.permute.xlu0 %1775
        %1777 = vrot.lane.b32.xlu0 %v1710, 32
        %v1778 = vpop.permute.xlu0 %1777
        %1779 = vrot.lane.b32.xlu0 %v1718, 32
        %v1780 = vpop.permute.xlu0 %1779
        %1781 = vrot.lane.b32.xlu0 %v1726, 32
        %v1782 = vpop.permute.xlu0 %1781
        %1783 = vrot.lane.b32.xlu0 %v1734, 32
        %v1784 = vpop.permute.xlu0 %1783
        %1785 = vrot.lane.b32.xlu0 %v1742, 32
        %v1786 = vpop.permute.xlu0 %1785
        %1787 = vrot.lane.b32.xlu0 %v1750, 32
        %v1788 = vpop.permute.xlu0 %1787
        %1789 = vrot.lane.b32.xlu0 %v1758, 32
        %v1790 = vpop.permute.xlu0 %1789
        %1791 = vrot.lane.b32.xlu0 %v1766, 32
        %v1792 = vpop.permute.xlu0 %1791
        %1793 = vrot.lane.b32.xlu0 %v1770, 32
        %v1794 = vpop.permute.xlu0 %1793
        %v1797 = vrot.slane %v1680, 1
        %v1798 = vsel %vm999, %v1000, %v1797
        %v1799 = vrot.slane %v1613, 1
        %v1800 = vsel %vm999, %v1797, %v1799
        %v1801 = vrot.slane %v1621, 1
        %v1802 = vsel %vm999, %v1799, %v1801
        %v1803 = vrot.slane %v1629, 1
        %v1804 = vsel %vm999, %v1801, %v1803
        %v1805 = vrot.slane %v1637, 1
        %v1806 = vsel %vm999, %v1803, %v1805
        %v1807 = vrot.slane %v1645, 1
        %v1808 = vsel %vm999, %v1805, %v1807
        %v1809 = vrot.slane %v1653, 1
        %v1810 = vsel %vm999, %v1807, %v1809
        %v1811 = vrot.slane %v1661, 1
        %v1812 = vsel %vm999, %v1809, %v1811
        %v1813 = vrot.slane %v1669, 1
        %v1814 = vsel %vm999, %v1811, %v1813
        %v1815 = vrot.slane %v1677, 1
        %v1816 = vsel %vm999, %v1813, %v1815
        %v1817 = vrot.slane %v1681, 1
        %v1818 = vsel %vm999, %v1815, %v1817
        %v1819 = vsel %vm999, %v1817, %v1000
        %1820 = vrot.lane.b32.xlu0 %v1798, 64
        %v1821 = vpop.permute.xlu0 %1820
        %1822 = vrot.lane.b32.xlu0 %v1800, 64
        %v1823 = vpop.permute.xlu0 %1822
        %1824 = vrot.lane.b32.xlu0 %v1802, 64
        %v1825 = vpop.permute.xlu0 %1824
        %1826 = vrot.lane.b32.xlu0 %v1804, 64
        %v1827 = vpop.permute.xlu0 %1826
        %1828 = vrot.lane.b32.xlu0 %v1806, 64
        %v1829 = vpop.permute.xlu0 %1828
        %1830 = vrot.lane.b32.xlu0 %v1808, 64
        %v1831 = vpop.permute.xlu0 %1830
        %1832 = vrot.lane.b32.xlu0 %v1810, 64
        %v1833 = vpop.permute.xlu0 %1832
        %1834 = vrot.lane.b32.xlu0 %v1812, 64
        %v1835 = vpop.permute.xlu0 %1834
        %1836 = vrot.lane.b32.xlu0 %v1814, 64
        %v1837 = vpop.permute.xlu0 %1836
        %1838 = vrot.lane.b32.xlu0 %v1816, 64
        %v1839 = vpop.permute.xlu0 %1838
        %1840 = vrot.lane.b32.xlu0 %v1818, 64
        %v1841 = vpop.permute.xlu0 %1840
        %1842 = vrot.lane.b32.xlu0 %v1819, 64
        %v1843 = vpop.permute.xlu0 %1842
        %v1845 = vsel %vm589, 0, %v1772
        %v1847 = vsel %vm589, %v1680, %v1774
        %v1849 = vsel %vm589, %v1613, %v1776
        %v1851 = vsel %vm589, %v1621, %v1778
        %v1853 = vsel %vm589, %v1629, %v1780
        %v1855 = vsel %vm589, %v1637, %v1782
        %v1857 = vsel %vm589, %v1645, %v1784
        %v1859 = vsel %vm589, %v1653, %v1786
        %v1861 = vsel %vm589, %v1661, %v1788
        %v1863 = vsel %vm589, %v1669, %v1790
        %v1865 = vsel %vm589, %v1677, %v1792
        %v1867 = vsel %vm589, %v1681, %v1794
        %v1869 = vsel %vm1072, %v1845, %v1821
        %v1871 = vsel %vm1072, %v1847, %v1823
        %v1873 = vsel %vm1072, %v1849, %v1825
        %v1875 = vsel %vm1072, %v1851, %v1827
        %v1877 = vsel %vm1072, %v1853, %v1829
        %v1879 = vsel %vm1072, %v1855, %v1831
        %v1881 = vsel %vm1072, %v1857, %v1833
        %v1883 = vsel %vm1072, %v1859, %v1835
        %v1885 = vsel %vm1072, %v1861, %v1837
        %v1887 = vsel %vm1072, %v1863, %v1839
        %v1889 = vsel %vm1072, %v1865, %v1841
        %v1891 = vsel %vm1072, %v1867, %v1843
        %v1892 = vld [vmem:[%s5] sm:$0xf]
        %v1893 = vld [vmem:[%s5 + $0x4] sm:$0xf]
        %v1894 = vld [vmem:[%s5 + $0x8] sm:$0xf]
        %v1895 = vld [vmem:[%s5 + $0xc] sm:$0xf]
        %v1896 = vld [vmem:[%s5 + $0x10] sm:$0xf]
        %v1897 = vld [vmem:[%s5 + $0x14] sm:$0xf]
        %v1898 = vld [vmem:[%s5 + $0x18] sm:$0xf]
        %v1899 = vld [vmem:[%s5 + $0x1c] sm:$0xf]
        %v1900 = vld [vmem:[%s5 + $0x20] sm:$0xf]
        %v1901 = vld [vmem:[%s5 + $0x24] sm:$0xf]
        %v1902 = vld [vmem:[%s5 + $0x28] sm:$0xf]
        %v1903 = vld [vmem:[%s5 + $0x2c] sm:$0xf]
        %s1904 = scalar_lea.vmem %s5, 48
        %v1905 = vld [vmem:[%s1904] sm:$0xf]
        %v1906 = vld [vmem:[%s1904 + $0x4] sm:$0xf]
        %v1907 = vld [vmem:[%s1904 + $0x8] sm:$0xf]
        %v1908 = vld [vmem:[%s1904 + $0xc] sm:$0xf]
        %v1909 = vld [vmem:[%s1904 + $0x10] sm:$0xf]
        %v1910 = vld [vmem:[%s1904 + $0x14] sm:$0xf]
        %v1911 = vld [vmem:[%s1904 + $0x18] sm:$0xf]
        %v1912 = vld [vmem:[%s1904 + $0x1c] sm:$0xf]
        %v1913 = vld [vmem:[%s1904 + $0x20] sm:$0xf]
        %v1914 = vld [vmem:[%s1904 + $0x24] sm:$0xf]
        %v1915 = vld [vmem:[%s1904 + $0x28] sm:$0xf]
        %v1916 = vld [vmem:[%s1904 + $0x2c] sm:$0xf]
        %v1929 = vunpack.c.l.b16 %v1905
        %v1930 = vunpack.c.l.b16 %v1906
        %v1931 = vunpack.c.l.b16 %v1907
        %v1932 = vunpack.c.l.b16 %v1908
        %v1933 = vunpack.c.l.b16 %v1909
        %v1934 = vunpack.c.l.b16 %v1910
        %v1935 = vunpack.c.l.b16 %v1911
        %v1936 = vunpack.c.l.b16 %v1912
        %v1937 = vunpack.c.l.b16 %v1913
        %v1938 = vunpack.c.l.b16 %v1914
        %v1939 = vunpack.c.l.b16 %v1915
        %v1940 = vunpack.c.l.b16 %v1916
        %v1941 = vpack.c.b16 %v1930, %v1929
        %v1942 = vpack.c.b16 %v1932, %v1931
        %v1943 = vpack.c.b16 %v1934, %v1933
        %v1944 = vpack.c.b16 %v1936, %v1935
        %v1945 = vpack.c.b16 %v1938, %v1937
        %v1946 = vpack.c.b16 %v1940, %v1939
        %v1953 = vsel %vm1158, %v1871, 0
        %v1955 = vsel %vm1158, %v1873, 0
        %v1957 = vsel %vm1158, %v1875, 0
        %v1959 = vsel %vm1158, %v1877, 0
        %v1961 = vsel %vm1158, %v1879, 0
        %v1963 = vsel %vm1158, %v1881, 0
        %v1965 = vsel %vm1158, %v1883, 0
        %v1967 = vsel %vm1158, %v1885, 0
        %v1969 = vsel %vm1158, %v1887, 0
        %v1971 = vsel %vm1158, %v1889, 0
        %1973 = vmatpush.bf16.msra.mxu0 0
        %1974 = vmatpush.bf16.msra.mxu0 0
        %1975 = vmatpush.bf16.msra.mxu0 %v1946
        %1976 = vmatpush.bf16.msra.mxu0 %v1945
        %1977 = vmatpush.bf16.msra.mxu0 %v1944
        %1978 = vmatpush.bf16.msra.mxu0 %v1943
        %1979 = vmatpush.bf16.msra.mxu0 %v1942
        %1980 = vmatpush.bf16.msra.mxu0 %v1941
        %1981 = vmatmul.bf16.gmra.mxu0 %v1953
        %v1982 = vpop.f32.mrf.mxu0
        %v1983 = vadd.f32 0.0, %v1982
        %v1984 = vpop.f32.mrf.mxu0
        %v1985 = vadd.f32 0.0, %v1984
        %1986 = vmatmul.bf16.gmra.mxu0 %v1955
        %v1987 = vpop.f32.mrf.mxu0
        %v1988 = vadd.f32 0.0, %v1987
        %v1989 = vpop.f32.mrf.mxu0
        %v1990 = vadd.f32 0.0, %v1989
        %1991 = vmatmul.bf16.gmra.mxu0 %v1957
        %v1992 = vpop.f32.mrf.mxu0
        %v1993 = vadd.f32 0.0, %v1992
        %v1994 = vpop.f32.mrf.mxu0
        %v1995 = vadd.f32 0.0, %v1994
        %1996 = vmatmul.bf16.gmra.mxu0 %v1959
        %v1997 = vpop.f32.mrf.mxu0
        %v1998 = vadd.f32 0.0, %v1997
        %v1999 = vpop.f32.mrf.mxu0
        %v2000 = vadd.f32 0.0, %v1999
        %2001 = vmatmul.bf16.gmra.mxu0 %v1961
        %v2002 = vpop.f32.mrf.mxu0
        %v2003 = vadd.f32 0.0, %v2002
        %v2004 = vpop.f32.mrf.mxu0
        %v2005 = vadd.f32 0.0, %v2004
        %2006 = vmatmul.bf16.gmra.mxu0 %v1963
        %v2007 = vpop.f32.mrf.mxu0
        %v2008 = vadd.f32 0.0, %v2007
        %v2009 = vpop.f32.mrf.mxu0
        %v2010 = vadd.f32 0.0, %v2009
        %2011 = vmatmul.bf16.gmra.mxu0 %v1965
        %v2012 = vpop.f32.mrf.mxu0
        %v2013 = vadd.f32 0.0, %v2012
        %v2014 = vpop.f32.mrf.mxu0
        %v2015 = vadd.f32 0.0, %v2014
        %2016 = vmatmul.bf16.gmra.mxu0 %v1967
        %v2017 = vpop.f32.mrf.mxu0
        %v2018 = vadd.f32 0.0, %v2017
        %v2019 = vpop.f32.mrf.mxu0
        %v2020 = vadd.f32 0.0, %v2019
        %2021 = vmatmul.bf16.gmra.mxu0 %v1969
        %v2022 = vpop.f32.mrf.mxu0
        %v2023 = vadd.f32 0.0, %v2022
        %v2024 = vpop.f32.mrf.mxu0
        %v2025 = vadd.f32 0.0, %v2024
        %2026 = vmatmul.bf16.gmra.mxu0 %v1971
        %v2027 = vpop.f32.mrf.mxu0
        %v2028 = vadd.f32 0.0, %v2027
        %v2029 = vpop.f32.mrf.mxu0
        %v2030 = vadd.f32 0.0, %v2029
        %2031 = vdwg.mxu0
        %v2044 = vunpack.c.l.b16 %v1892
        %v2045 = vunpack.c.l.b16 %v1893
        %v2046 = vunpack.c.l.b16 %v1894
        %v2047 = vunpack.c.l.b16 %v1895
        %v2048 = vunpack.c.l.b16 %v1896
        %v2049 = vunpack.c.l.b16 %v1897
        %v2050 = vunpack.c.l.b16 %v1898
        %v2051 = vunpack.c.l.b16 %v1899
        %v2052 = vunpack.c.l.b16 %v1900
        %v2053 = vunpack.c.l.b16 %v1901
        %v2054 = vunpack.c.l.b16 %v1902
        %v2055 = vunpack.c.l.b16 %v1903
        %v2056 = vpack.c.b16 %v2045, %v2044
        %v2057 = vpack.c.b16 %v2047, %v2046
        %v2058 = vpack.c.b16 %v2049, %v2048
        %v2059 = vpack.c.b16 %v2051, %v2050
        %v2060 = vpack.c.b16 %v2053, %v2052
        %v2061 = vpack.c.b16 %v2055, %v2054
        %v2068 = vsel %vm1158, %v1869, 0
        %2070 = vmatpush.bf16.msra.mxu0 0
        %2071 = vmatpush.bf16.msra.mxu0 0
        %2072 = vmatpush.bf16.msra.mxu0 %v2061
        %2073 = vmatpush.bf16.msra.mxu0 %v2060
        %2074 = vmatpush.bf16.msra.mxu0 %v2059
        %2075 = vmatpush.bf16.msra.mxu0 %v2058
        %2076 = vmatpush.bf16.msra.mxu0 %v2057
        %2077 = vmatpush.bf16.msra.mxu0 %v2056
        %2078 = vmatmul.bf16.gmra.mxu0 %v2068
        %v2079 = vpop.f32.mrf.mxu0
        %v2080 = vadd.f32 %v1983, %v2079
        %v2081 = vpop.f32.mrf.mxu0
        %v2082 = vadd.f32 %v1985, %v2081
        %2083 = vmatmul.bf16.gmra.mxu0 %v1953
        %v2084 = vpop.f32.mrf.mxu0
        %v2085 = vadd.f32 %v1988, %v2084
        %v2086 = vpop.f32.mrf.mxu0
        %v2087 = vadd.f32 %v1990, %v2086
        %2088 = vmatmul.bf16.gmra.mxu0 %v1955
        %v2089 = vpop.f32.mrf.mxu0
        %v2090 = vadd.f32 %v1993, %v2089
        %v2091 = vpop.f32.mrf.mxu0
        %v2092 = vadd.f32 %v1995, %v2091
        %2093 = vmatmul.bf16.gmra.mxu0 %v1957
        %v2094 = vpop.f32.mrf.mxu0
        %v2095 = vadd.f32 %v1998, %v2094
        %v2096 = vpop.f32.mrf.mxu0
        %v2097 = vadd.f32 %v2000, %v2096
        %2098 = vmatmul.bf16.gmra.mxu0 %v1959
        %v2099 = vpop.f32.mrf.mxu0
        %v2100 = vadd.f32 %v2003, %v2099
        %v2101 = vpop.f32.mrf.mxu0
        %v2102 = vadd.f32 %v2005, %v2101
        %2103 = vmatmul.bf16.gmra.mxu0 %v1961
        %v2104 = vpop.f32.mrf.mxu0
        %v2105 = vadd.f32 %v2008, %v2104
        %v2106 = vpop.f32.mrf.mxu0
        %v2107 = vadd.f32 %v2010, %v2106
        %2108 = vmatmul.bf16.gmra.mxu0 %v1963
        %v2109 = vpop.f32.mrf.mxu0
        %v2110 = vadd.f32 %v2013, %v2109
        %v2111 = vpop.f32.mrf.mxu0
        %v2112 = vadd.f32 %v2015, %v2111
        %2113 = vmatmul.bf16.gmra.mxu0 %v1965
        %v2114 = vpop.f32.mrf.mxu0
        %v2115 = vadd.f32 %v2018, %v2114
        %v2116 = vpop.f32.mrf.mxu0
        %v2117 = vadd.f32 %v2020, %v2116
        %2118 = vmatmul.bf16.gmra.mxu0 %v1967
        %v2119 = vpop.f32.mrf.mxu0
        %v2120 = vadd.f32 %v2023, %v2119
        %v2121 = vpop.f32.mrf.mxu0
        %v2122 = vadd.f32 %v2025, %v2121
        %2123 = vmatmul.bf16.gmra.mxu0 %v1969
        %v2124 = vpop.f32.mrf.mxu0
        %v2125 = vadd.f32 %v2028, %v2124
        %v2126 = vpop.f32.mrf.mxu0
        %v2127 = vadd.f32 %v2030, %v2126
        %2128 = vdwg.mxu0
        %s2129 = scalar_lea.vmem %s5, 96
        %v2130 = vld [vmem:[%s2129] sm:$0xf]
        %v2131 = vld [vmem:[%s2129 + $0x4] sm:$0xf]
        %v2132 = vld [vmem:[%s2129 + $0x8] sm:$0xf]
        %v2133 = vld [vmem:[%s2129 + $0xc] sm:$0xf]
        %v2134 = vld [vmem:[%s2129 + $0x10] sm:$0xf]
        %v2135 = vld [vmem:[%s2129 + $0x14] sm:$0xf]
        %v2136 = vld [vmem:[%s2129 + $0x18] sm:$0xf]
        %v2137 = vld [vmem:[%s2129 + $0x1c] sm:$0xf]
        %v2138 = vld [vmem:[%s2129 + $0x20] sm:$0xf]
        %v2139 = vld [vmem:[%s2129 + $0x24] sm:$0xf]
        %v2140 = vld [vmem:[%s2129 + $0x28] sm:$0xf]
        %v2141 = vld [vmem:[%s2129 + $0x2c] sm:$0xf]
        %v2154 = vunpack.c.l.b16 %v2130
        %v2155 = vunpack.c.l.b16 %v2131
        %v2156 = vunpack.c.l.b16 %v2132
        %v2157 = vunpack.c.l.b16 %v2133
        %v2158 = vunpack.c.l.b16 %v2134
        %v2159 = vunpack.c.l.b16 %v2135
        %v2160 = vunpack.c.l.b16 %v2136
        %v2161 = vunpack.c.l.b16 %v2137
        %v2162 = vunpack.c.l.b16 %v2138
        %v2163 = vunpack.c.l.b16 %v2139
        %v2164 = vunpack.c.l.b16 %v2140
        %v2165 = vunpack.c.l.b16 %v2141
        %v2166 = vpack.c.b16 %v2155, %v2154
        %v2167 = vpack.c.b16 %v2157, %v2156
        %v2168 = vpack.c.b16 %v2159, %v2158
        %v2169 = vpack.c.b16 %v2161, %v2160
        %v2170 = vpack.c.b16 %v2163, %v2162
        %v2171 = vpack.c.b16 %v2165, %v2164
        %v2178 = vsel %vm1158, %v1891, 0
        %2180 = vmatpush.bf16.msra.mxu0 0
        %2181 = vmatpush.bf16.msra.mxu0 0
        %2182 = vmatpush.bf16.msra.mxu0 %v2171
        %2183 = vmatpush.bf16.msra.mxu0 %v2170
        %2184 = vmatpush.bf16.msra.mxu0 %v2169
        %2185 = vmatpush.bf16.msra.mxu0 %v2168
        %2186 = vmatpush.bf16.msra.mxu0 %v2167
        %2187 = vmatpush.bf16.msra.mxu0 %v2166
        %2188 = vmatmul.bf16.gmra.mxu0 %v1955
        %v2189 = vpop.f32.mrf.mxu0
        %v2190 = vadd.f32 0.0, %v2189
        %v2191 = vpop.f32.mrf.mxu0
        %v2192 = vadd.f32 0.0, %v2191
        %2193 = vmatmul.bf16.gmra.mxu0 %v1957
        %v2194 = vpop.f32.mrf.mxu0
        %v2195 = vadd.f32 0.0, %v2194
        %v2196 = vpop.f32.mrf.mxu0
        %v2197 = vadd.f32 0.0, %v2196
        %2198 = vmatmul.bf16.gmra.mxu0 %v1959
        %v2199 = vpop.f32.mrf.mxu0
        %v2200 = vadd.f32 0.0, %v2199
        %v2201 = vpop.f32.mrf.mxu0
        %v2202 = vadd.f32 0.0, %v2201
        %2203 = vmatmul.bf16.gmra.mxu0 %v1961
        %v2204 = vpop.f32.mrf.mxu0
        %v2205 = vadd.f32 0.0, %v2204
        %v2206 = vpop.f32.mrf.mxu0
        %v2207 = vadd.f32 0.0, %v2206
        %2208 = vmatmul.bf16.gmra.mxu0 %v1963
        %v2209 = vpop.f32.mrf.mxu0
        %v2210 = vadd.f32 0.0, %v2209
        %v2211 = vpop.f32.mrf.mxu0
        %v2212 = vadd.f32 0.0, %v2211
        %2213 = vmatmul.bf16.gmra.mxu0 %v1965
        %v2214 = vpop.f32.mrf.mxu0
        %v2215 = vadd.f32 0.0, %v2214
        %v2216 = vpop.f32.mrf.mxu0
        %v2217 = vadd.f32 0.0, %v2216
        %2218 = vmatmul.bf16.gmra.mxu0 %v1967
        %v2219 = vpop.f32.mrf.mxu0
        %v2220 = vadd.f32 0.0, %v2219
        %v2221 = vpop.f32.mrf.mxu0
        %v2222 = vadd.f32 0.0, %v2221
        %2223 = vmatmul.bf16.gmra.mxu0 %v1969
        %v2224 = vpop.f32.mrf.mxu0
        %v2225 = vadd.f32 0.0, %v2224
        %v2226 = vpop.f32.mrf.mxu0
        %v2227 = vadd.f32 0.0, %v2226
        %2228 = vmatmul.bf16.gmra.mxu0 %v1971
        %v2229 = vpop.f32.mrf.mxu0
        %v2230 = vadd.f32 0.0, %v2229
        %v2231 = vpop.f32.mrf.mxu0
        %v2232 = vadd.f32 0.0, %v2231
        %2233 = vmatmul.bf16.gmra.mxu0 %v2178
        %v2234 = vpop.f32.mrf.mxu0
        %v2235 = vadd.f32 0.0, %v2234
        %v2236 = vpop.f32.mrf.mxu0
        %v2237 = vadd.f32 0.0, %v2236
        %2238 = vdwg.mxu0
        %v2239 = vadd.f32 %v2080, %v2190
        %v2240 = vadd.f32 %v2082, %v2192
        %v2241 = vadd.f32 %v2085, %v2195
        %v2242 = vadd.f32 %v2087, %v2197
        %v2243 = vadd.f32 %v2090, %v2200
        %v2244 = vadd.f32 %v2092, %v2202
        %v2245 = vadd.f32 %v2095, %v2205
        %v2246 = vadd.f32 %v2097, %v2207
        %v2247 = vadd.f32 %v2100, %v2210
        %v2248 = vadd.f32 %v2102, %v2212
        %v2249 = vadd.f32 %v2105, %v2215
        %v2250 = vadd.f32 %v2107, %v2217
        %v2251 = vadd.f32 %v2110, %v2220
        %v2252 = vadd.f32 %v2112, %v2222
        %v2253 = vadd.f32 %v2115, %v2225
        %v2254 = vadd.f32 %v2117, %v2227
        %v2255 = vadd.f32 %v2120, %v2230
        %v2256 = vadd.f32 %v2122, %v2232
        %v2257 = vadd.f32 %v2125, %v2235
        %v2258 = vadd.f32 %v2127, %v2237
        %v2259 = vld [vmem:[%s6] sm:$0x1]
        %v2261 = vperm.slane %v2259, 0
        %v2263 = vadd.f32 %v2239, %v2261
        %v2264 = vadd.f32 %v2240, %v2261
        %v2265 = vadd.f32 %v2241, %v2261
        %v2266 = vadd.f32 %v2242, %v2261
        %v2267 = vadd.f32 %v2243, %v2261
        %v2268 = vadd.f32 %v2244, %v2261
        %v2269 = vadd.f32 %v2245, %v2261
        %v2270 = vadd.f32 %v2246, %v2261
        %v2271 = vadd.f32 %v2247, %v2261
        %v2272 = vadd.f32 %v2248, %v2261
        %v2273 = vadd.f32 %v2249, %v2261
        %v2274 = vadd.f32 %v2250, %v2261
        %v2275 = vadd.f32 %v2251, %v2261
        %v2276 = vadd.f32 %v2252, %v2261
        %v2277 = vadd.f32 %v2253, %v2261
        %v2278 = vadd.f32 %v2254, %v2261
        %v2279 = vadd.f32 %v2255, %v2261
        %v2280 = vadd.f32 %v2256, %v2261
        %v2281 = vadd.f32 %v2257, %v2261
        %v2282 = vadd.f32 %v2258, %v2261
        %v2283 = vmax.f32 %v2263, 0.0
        %v2284 = vmax.f32 %v2264, 0.0
        %v2285 = vmax.f32 %v2265, 0.0
        %v2286 = vmax.f32 %v2266, 0.0
        %v2287 = vmax.f32 %v2267, 0.0
        %v2288 = vmax.f32 %v2268, 0.0
        %v2289 = vmax.f32 %v2269, 0.0
        %v2290 = vmax.f32 %v2270, 0.0
        %v2291 = vmax.f32 %v2271, 0.0
        %v2292 = vmax.f32 %v2272, 0.0
        %v2293 = vmax.f32 %v2273, 0.0
        %v2294 = vmax.f32 %v2274, 0.0
        %v2295 = vmax.f32 %v2275, 0.0
        %v2296 = vmax.f32 %v2276, 0.0
        %v2297 = vmax.f32 %v2277, 0.0
        %v2298 = vmax.f32 %v2278, 0.0
        %v2299 = vmax.f32 %v2279, 0.0
        %v2300 = vmax.f32 %v2280, 0.0
        %v2301 = vmax.f32 %v2281, 0.0
        %v2302 = vmax.f32 %v2282, 0.0
        %v2303 = vmul.f32 %v2283, %v479
        %v2304 = vmul.f32 %v2284, %v480
        %v2305 = vmul.f32 %v2285, %v481
        %v2306 = vmul.f32 %v2286, %v482
        %v2307 = vmul.f32 %v2287, %v483
        %v2308 = vmul.f32 %v2288, %v484
        %v2309 = vmul.f32 %v2289, %v485
        %v2310 = vmul.f32 %v2290, %v486
        %v2311 = vmul.f32 %v2291, %v487
        %v2312 = vmul.f32 %v2292, %v488
        %v2313 = vmul.f32 %v2293, %v489
        %v2314 = vmul.f32 %v2294, %v490
        %v2315 = vmul.f32 %v2295, %v491
        %v2316 = vmul.f32 %v2296, %v492
        %v2317 = vmul.f32 %v2297, %v493
        %v2318 = vmul.f32 %v2298, %v494
        %v2319 = vmul.f32 %v2299, %v495
        %v2320 = vmul.f32 %v2300, %v496
        %v2321 = vmul.f32 %v2301, %v497
        %v2322 = vmul.f32 %v2302, %v498
        %2323 = vst.msk [vmem:[#allocation2] sm:$0xff] %vm1072, %v2303
        %2324 = vst.msk [vmem:[#allocation2 + $0x8] sm:$0xff] %vm1072, %v2304
        %2325 = vst.msk [vmem:[#allocation2 + $0x10] sm:$0xff] %vm1072, %v2305
        %2326 = vst.msk [vmem:[#allocation2 + $0x18] sm:$0xff] %vm1072, %v2306
        %2327 = vst.msk [vmem:[#allocation2 + $0x20] sm:$0xff] %vm1072, %v2307
        %2328 = vst.msk [vmem:[#allocation2 + $0x28] sm:$0xff] %vm1072, %v2308
        %2329 = vst.msk [vmem:[#allocation2 + $0x30] sm:$0xff] %vm1072, %v2309
        %2330 = vst.msk [vmem:[#allocation2 + $0x38] sm:$0xff] %vm1072, %v2310
        %2331 = vst.msk [vmem:[#allocation2 + $0x40] sm:$0xff] %vm1072, %v2311
        %2332 = vst.msk [vmem:[#allocation2 + $0x48] sm:$0xff] %vm1072, %v2312
        %2333 = vst.msk [vmem:[#allocation2 + $0x50] sm:$0xff] %vm1072, %v2313
        %2334 = vst.msk [vmem:[#allocation2 + $0x58] sm:$0xff] %vm1072, %v2314
        %2335 = vst.msk [vmem:[#allocation2 + $0x60] sm:$0xff] %vm1072, %v2315
        %2336 = vst.msk [vmem:[#allocation2 + $0x68] sm:$0xff] %vm1072, %v2316
        %2337 = vst.msk [vmem:[#allocation2 + $0x70] sm:$0xff] %vm1072, %v2317
        %2338 = vst.msk [vmem:[#allocation2 + $0x78] sm:$0xff] %vm1072, %v2318
        %2339 = vst.msk [vmem:[#allocation2 + $0x80] sm:$0xff] %vm1072, %v2319
        %2340 = vst.msk [vmem:[#allocation2 + $0x88] sm:$0xff] %vm1072, %v2320
        %2341 = vst.msk [vmem:[#allocation2 + $0x90] sm:$0xff] %vm1072, %v2321
        %2342 = vst.msk [vmem:[#allocation2 + $0x98] sm:$0xff] %vm1072, %v2322
        %2343 = vst.msk [vmem:[#allocation2 + $0xa0] sm:$0xff] %vm1072, 0.0
        %v2344 = vld [vmem:[#allocation2] ss:$2 sm:$0xff]
        %s2345 = scalar_lea.vmem [#allocation2], 16
        %v2346 = vld [vmem:[%s2345] ss:$2 sm:$0xff]
        %s2347 = scalar_lea.vmem [#allocation2], 32
        %v2348 = vld [vmem:[%s2347] ss:$2 sm:$0xff]
        %s2349 = scalar_lea.vmem [#allocation2], 48
        %v2350 = vld [vmem:[%s2349] ss:$2 sm:$0xff]
        %s2351 = scalar_lea.vmem [#allocation2], 64
        %v2352 = vld [vmem:[%s2351] ss:$2 sm:$0xff]
        %s2353 = scalar_lea.vmem [#allocation2], 80
        %v2354 = vld [vmem:[%s2353] ss:$2 sm:$0xff]
        %s2355 = scalar_lea.vmem [#allocation2], 96
        %v2356 = vld [vmem:[%s2355] ss:$2 sm:$0xff]
        %s2357 = scalar_lea.vmem [#allocation2], 112
        %v2358 = vld [vmem:[%s2357] ss:$2 sm:$0xff]
        %s2359 = scalar_lea.vmem [#allocation2], 128
        %v2360 = vld [vmem:[%s2359] ss:$2 sm:$0xff]
        %s2361 = scalar_lea.vmem [#allocation2], 1
        %v2362 = vld [vmem:[%s2361] ss:$2 sm:$0xff]
        %s2363 = scalar_lea.vmem [#allocation2], 17
        %v2364 = vld [vmem:[%s2363] ss:$2 sm:$0xff]
        %s2365 = scalar_lea.vmem [#allocation2], 33
        %v2366 = vld [vmem:[%s2365] ss:$2 sm:$0xff]
        %s2367 = scalar_lea.vmem [#allocation2], 49
        %v2368 = vld [vmem:[%s2367] ss:$2 sm:$0xff]
        %s2369 = scalar_lea.vmem [#allocation2], 65
        %v2370 = vld [vmem:[%s2369] ss:$2 sm:$0xff]
        %s2371 = scalar_lea.vmem [#allocation2], 81
        %v2372 = vld [vmem:[%s2371] ss:$2 sm:$0xff]
        %s2373 = scalar_lea.vmem [#allocation2], 97
        %v2374 = vld [vmem:[%s2373] ss:$2 sm:$0xff]
        %s2375 = scalar_lea.vmem [#allocation2], 113
        %v2376 = vld [vmem:[%s2375] ss:$2 sm:$0xff]
        %s2377 = scalar_lea.vmem [#allocation2], 129
        %v2378 = vld [vmem:[%s2377] ss:$2 sm:$0xff]
        %s2379 = scalar_lea.vmem [#allocation2], 2
        %v2380 = vld [vmem:[%s2379] ss:$2 sm:$0xff]
        %s2381 = scalar_lea.vmem [#allocation2], 18
        %v2382 = vld [vmem:[%s2381] ss:$2 sm:$0xff]
        %s2383 = scalar_lea.vmem [#allocation2], 34
        %v2384 = vld [vmem:[%s2383] ss:$2 sm:$0xff]
        %s2385 = scalar_lea.vmem [#allocation2], 50
        %v2386 = vld [vmem:[%s2385] ss:$2 sm:$0xff]
        %s2387 = scalar_lea.vmem [#allocation2], 66
        %v2388 = vld [vmem:[%s2387] ss:$2 sm:$0xff]
        %s2389 = scalar_lea.vmem [#allocation2], 82
        %v2390 = vld [vmem:[%s2389] ss:$2 sm:$0xff]
        %s2391 = scalar_lea.vmem [#allocation2], 98
        %v2392 = vld [vmem:[%s2391] ss:$2 sm:$0xff]
        %s2393 = scalar_lea.vmem [#allocation2], 114
        %v2394 = vld [vmem:[%s2393] ss:$2 sm:$0xff]
        %s2395 = scalar_lea.vmem [#allocation2], 130
        %v2396 = vld [vmem:[%s2395] ss:$2 sm:$0xff]
        %v2397 = vmax.f32 %v2344, %v2362
        %v2398 = vmax.f32 %v2346, %v2364
        %v2399 = vmax.f32 %v2348, %v2366
        %v2400 = vmax.f32 %v2350, %v2368
        %v2401 = vmax.f32 %v2352, %v2370
        %v2402 = vmax.f32 %v2354, %v2372
        %v2403 = vmax.f32 %v2356, %v2374
        %v2404 = vmax.f32 %v2358, %v2376
        %v2405 = vmax.f32 %v2360, %v2378
        %v2406 = vmax.f32 %v2397, %v2380
        %v2407 = vmax.f32 %v2398, %v2382
        %v2408 = vmax.f32 %v2399, %v2384
        %v2409 = vmax.f32 %v2400, %v2386
        %v2410 = vmax.f32 %v2401, %v2388
        %v2411 = vmax.f32 %v2402, %v2390
        %v2412 = vmax.f32 %v2403, %v2392
        %v2413 = vmax.f32 %v2404, %v2394
        %v2414 = vmax.f32 %v2405, %v2396
        %v2415 = vmax.f32 %v2406, %v2407
        %v2416 = vmax.f32 %v2415, %v2408
        %v2417 = vmax.f32 %v2408, %v2409
        %v2418 = vmax.f32 %v2417, %v2410
        %v2419 = vmax.f32 %v2410, %v2411
        %v2420 = vmax.f32 %v2419, %v2412
        %v2421 = vmax.f32 %v2412, %v2413
        %v2422 = vmax.f32 %v2421, %v2414
        %v2424 = vrot.slane %v2418, 4
        %v2427 = vrot.slane %v2422, 4
        %vm2429 = vcmask 1043456
        %v2430 = vsel %vm2429, %v2416, %v2424
        %v2431 = vsel %vm2429, %v2420, %v2427
        %2432 = vst.msk [vmem:[%s271] sm:$0xff] %vm1072, %v2430
        %2433 = vst.msk [vmem:[%s271 + $0x8] sm:$0xff] %vm1072, %v2431
        %s2434 = sand.u32 %s181, 1
        %s2435 = scalar_lea.sflag [#allocation4], %s2434
        %s2436 = sand.u32 %s181, 1
        %s2437 = smul.addr %s2436, 16
        %s2438 = scalar_lea.vmem [#allocation3], %s2437
        // Predicated region
        $region49: #{conv_tokenizer_forward.1} parent=47 // pred_check
          %p2439 = pneg %p191
        $region50: #{conv_tokenizer_forward.1} parent=47 // pred_check_branch
          %2441 = sbr.rel (%p2439) target = $region52
        $region51: #{conv_tokenizer_forward.1} parent=47 // pred_region
          %2443 = vsyncadd %s2435, 0
          %s2444 = smul.addr %s21, 2
          %s2445 = smul.addr %s2444, 8
          %s2446 = scalar_lea.hbm %s7, %s2445
          %s2447 = sshll.u32 %s2438, 4
          %s2448 = int_to_ptr.vmem [resolvable:$true] %s2447
          %s2449 = sshll.u32 %s2446, 4
          %s2450 = int_to_ptr.hbm [resolvable:$true] %s2449
          %2455 = dma.vmem_to_hbm [thread:$0]  %s2448, 256, %s2450, %s2435, 128, 128, 8
        $region52: #{conv_tokenizer_forward.1} parent=47 // pred_fallthru
          _
      $region48: #{conv_tokenizer_forward.1} parent=5 // pred_fallthru
        _
      %p2456 = scmp.le.s32.totalorder 2, %s16
      // Predicated region
      $region53: #{conv_tokenizer_forward.1} parent=5 // pred_check
        %p2457 = pneg %p2456
      $region54: #{conv_tokenizer_forward.1} parent=5 // pred_check_branch
        %2459 = sbr.rel (%p2457) target = $region56
      $region55: #{conv_tokenizer_forward.1} parent=5 // pred_region
        %s2460 = ssub.s32 %s16, 2
        // Predicated region
        $region57: #{conv_tokenizer_forward.1} parent=55 // pred_check
          %p2461 = pneg %p197
        $region58: #{conv_tokenizer_forward.1} parent=55 // pred_check_branch
          %2463 = sbr.rel (%p2461) target = $region60
        $region59: #{conv_tokenizer_forward.1} parent=55 // pred_region
          %s2464 = sand.u32 %s182, 1
          %s2465 = scalar_lea.sflag [#allocation4], %s2464
          %s2466 = sand.u32 %s182, 1
          %s2467 = smul.addr %s2466, 16
          %s2468 = scalar_lea.vmem [#allocation3], %s2467
          %2470 = dma.done %s2465, 256
        $region60: #{conv_tokenizer_forward.1} parent=55 // pred_fallthru
          _
      $region56: #{conv_tokenizer_forward.1} parent=5 // pred_fallthru
        _
    $region6: #{conv_tokenizer_forward.1} parent=1 // loop_footer
      %s20 = sadd.s32 1, %s16
    $region7: #{conv_tokenizer_forward.1} parent=1 // loop_footer_branch
      %15 = sbr.rel target = $region3
    $region8: #{conv_tokenizer_forward.1} parent=1 // loop_exit
      _
    %2471 = vsyncpa [#allocation4], 1
    %s2472 = scalar_lea.sflag [#allocation4], 1
    %2473 = vsyncpa %s2472, 1

</llo_original>
